<compile_context>
chip_gen: v7x
topology: tpu7x:2x2x1
jax: 0.10.0
libtpu: 0.0.40
codegen_flags: <defaults>
</compile_context>

<pallas_src>
import jax
import jax.numpy as jnp
from jax import lax
from jax.experimental import pallas as pl
from jax.experimental.pallas import tpu as pltpu


def _mycnn_kernel(x_ref, w1_ref, b1_ref, w2_ref, b2_ref, w3_ref, b3_ref, o_ref):
    # x_ref: (2, TS, 128) pixel tile (channels, sublane-rows, lanes), f32
    # o_ref: (1, TS, 128)
    # w*/b* live in SMEM; read once as scalars and broadcast on the VPU.
    n_rows = x_ref.shape[1]
    if n_rows % 8 == 0 and n_rows >= 8:
        cs = 8                       # 8 sublane-rows = one f32 vreg per channel
    else:
        cs = n_rows                  # small / irregular tile: single chunk
    n_chunks = n_rows // cs

    # Hoist every SMEM scalar read out of the pixel loop (loop-invariant).
    w1 = [[w1_ref[ci, co] for co in range(8)] for ci in range(2)]
    b1 = [b1_ref[co] for co in range(8)]
    w2 = [[w2_ref[ci, co] for co in range(8)] for ci in range(8)]
    b2 = [b2_ref[co] for co in range(8)]
    w3 = [w3_ref[ci, 0] for ci in range(8)]
    b3 = b3_ref[0]

    def chunk(r0):
        x0 = x_ref[0, pl.ds(r0, cs), :]          # (cs, 128)
        x1 = x_ref[1, pl.ds(r0, cs), :]

        # Layer 1: Conv2d(2, 8, 1) + ReLU
        h1 = [
            jnp.maximum(w1[0][co] * x0 + w1[1][co] * x1 + b1[co], 0.0)
            for co in range(8)
        ]

        # Layer 2: Conv2d(8, 8, 1) + ReLU
        h2 = []
        for co in range(8):
            a = h1[0] * w2[0][co]
            for ci in range(1, 8):
                a = a + h1[ci] * w2[ci][co]
            h2.append(jnp.maximum(a + b2[co], 0.0))

        # Layer 3: Conv2d(8, 1, 1)
        y = h2[0] * w3[0]
        for ci in range(1, 8):
            y = y + h2[ci] * w3[ci]
        y = y + b3

        o_ref[0, pl.ds(r0, cs), :] = y.astype(o_ref.dtype)

    if n_chunks == 1:
        chunk(0)
    else:
        def body(c, carry):
            chunk(pl.multiple_of(c * cs, cs))
            return carry

        lax.fori_loop(0, n_chunks, body, 0, unroll=min(n_chunks, 4))


def _pick_rows(r, cap=512):
    """Largest multiple of 8 that divides r (<= cap); else the full extent."""
    if r % 8 != 0:
        return r
    best = 8
    k = 8
    while k <= min(r, cap):
        if r % k == 0:
            best = k
        k += 8
    return best


def mycnn_forward(x_nchw, params):
    """x_nchw: (N, 2, H, W) float32 -> (N, 1, H, W) float32."""
    w1, b1, w2, b2, w3, b3 = params
    N, C, H, W = x_nchw.shape
    assert C == 2
    HW = H * W

    smem = pl.BlockSpec(memory_space=pltpu.MemorySpace.SMEM)

    if HW % 128 == 0:
        R = HW // 128                       # 128-pixel lane rows
        TS = _pick_rows(R)                  # sublane-rows per block
        xv = x_nchw.reshape(N, C, R, 128)   # pure view of NCHW, no transpose
        grid = (N, R // TS)
        x_spec = pl.BlockSpec((None, C, TS, 128), lambda n, j: (n, 0, j, 0))
        out_spec = pl.BlockSpec((None, 1, TS, 128), lambda n, j: (n, 0, j, 0))
        out_shape = jax.ShapeDtypeStruct((N, 1, R, 128), jnp.float32)
    else:
        # Fallback for H*W not a multiple of 128: one lane-dense row per batch.
        xv = x_nchw.reshape(N, C, 1, HW)
        grid = (N, 1)
        x_spec = pl.BlockSpec((None, C, 1, HW), lambda n, j: (n, 0, 0, 0))
        out_spec = pl.BlockSpec((None, 1, 1, HW), lambda n, j: (n, 0, 0, 0))
        out_shape = jax.ShapeDtypeStruct((N, 1, 1, HW), jnp.float32)

    out = pl.pallas_call(
        _mycnn_kernel,
        out_shape=out_shape,
        grid_spec=pltpu.PrefetchScalarGridSpec(
            num_scalar_prefetch=0,
            grid=grid,
            in_specs=[
                x_spec,   # x tile (lane-dense pixels)
                smem,     # W1 (2, 8)
                smem,     # b1 (8,)
                smem,     # W2 (8, 8)
                smem,     # b2 (8,)
                smem,     # W3 (8, 1)
                smem,     # b3 (1,)
            ],
            out_specs=out_spec,
        ),
        compiler_params=pltpu.CompilerParams(
            dimension_semantics=("parallel", "parallel"),
        ),
    )(xv, w1, b1, w2, b2, w3, b3)

    return out.reshape(N, 1, H, W)


def init_params(key):
    """Deterministic init matching the nn.Conv2d shapes (kaiming-uniform-like bounds)."""
    ks = jax.random.split(key, 6)

    def w_init(k, cin, cout):
        bound = 1.0 / jnp.sqrt(cin)  # fan_in = cin * 1 * 1
        return jax.random.uniform(k, (cin, cout), jnp.float32, -bound, bound)

    def b_init(k, cin, cout):
        bound = 1.0 / jnp.sqrt(cin)
        return jax.random.uniform(k, (cout,), jnp.float32, -bound, bound)

    w1 = w_init(ks[0], 2, 8)
    b1 = b_init(ks[1], 2, 8)
    w2 = w_init(ks[2], 8, 8)
    b2 = b_init(ks[3], 8, 8)
    w3 = w_init(ks[4], 8, 1)
    b3 = b_init(ks[5], 8, 1)
    return (w1, b1, w2, b2, w3, b3)


def _reference(x_nchw, params):
    """Plain-JAX reference of the same stack of 1x1 convs (for verification)."""
    w1, b1, w2, b2, w3, b3 = params
    N, C, H, W = x_nchw.shape
    x2d = jnp.transpose(x_nchw, (0, 2, 3, 1)).reshape(-1, C)
    h1 = jnp.maximum(x2d @ w1 + b1, 0.0)
    h2 = jnp.maximum(h1 @ w2 + b2, 0.0)
    out = h2 @ w3 + b3
    return jnp.transpose(out.reshape(N, H, W, 1), (0, 3, 1, 2))


if __name__ == "__main__":
    key = jax.random.PRNGKey(0)
    kx, kx2, kp = jax.random.split(key, 3)

    params = init_params(kp)

    # Small shape consistent with Conv2d(2, ...): (N=2, C=2, H=16, W=16)
    N, C, H, W = 2, 2, 16, 16
    x = jax.random.normal(kx, (N, C, H, W), jnp.float32)
    out = jax.block_until_ready(mycnn_forward(x, params))
    ref = _reference(x, params)
    assert out.shape == (N, 1, H, W)
    assert jnp.allclose(out, ref, atol=1e-5, rtol=1e-5)

    # Second shape exercising the multi-chunk (unrolled fori_loop) path.
    H2 = W2 = 64
    x2 = jax.random.normal(kx2, (N, C, H2, W2), jnp.float32)
    out2 = jax.block_until_ready(mycnn_forward(x2, params))
    ref2 = _reference(x2, params)
    assert out2.shape == (N, 1, H2, W2)
    assert jnp.allclose(out2, ref2, atol=1e-5, rtol=1e-5)

    print("KERNEL_OK")
</pallas_src>

<mosaic_0001>
module attributes {stable_mosaic.version = 11 : i64} {
  func.func @_mycnn_kernel(%arg0: i32, %arg1: i32, %arg2: memref<1x2x2x128xf32, #tpu.memory_space<vmem>>, %arg3: memref<2x8xf32, #tpu.memory_space<smem>>, %arg4: memref<8xf32, #tpu.memory_space<smem>>, %arg5: memref<8x8xf32, #tpu.memory_space<smem>>, %arg6: memref<8xf32, #tpu.memory_space<smem>>, %arg7: memref<8x1xf32, #tpu.memory_space<smem>>, %arg8: memref<1xf32, #tpu.memory_space<smem>>, %arg9: memref<1x1x2x128xf32, #tpu.memory_space<vmem>>) attributes {dimension_semantics = [#tpu.dimension_semantics<parallel>, #tpu.dimension_semantics<parallel>], iteration_bounds = array<i64: 2, 1>, scalar_prefetch = 0 : i64, scratch_operands = 0 : i64, tpu.core_type = #tpu.core_type<tc>, window_params = [{transform_indices = @transform_0, window_bounds = array<i64: 1, 2, 2, 128>}, {transform_indices = @transform_1, window_bounds = array<i64: 2, 8>}, {transform_indices = @transform_2, window_bounds = array<i64: 8>}, {transform_indices = @transform_3, window_bounds = array<i64: 8, 8>}, {transform_indices = @transform_4, window_bounds = array<i64: 8>}, {transform_indices = @transform_5, window_bounds = array<i64: 8, 1>}, {transform_indices = @transform_6, window_bounds = array<i64: 1>}, {transform_indices = @transform_7, window_bounds = array<i64: 1, 1, 2, 128>}]} {
    %c0 = arith.constant 0 : index
    %c0_0 = arith.constant 0 : index
    %0 = memref.load %arg3[%c0, %c0_0] : memref<2x8xf32, #tpu.memory_space<smem>>
    %c0_1 = arith.constant 0 : index
    %c1 = arith.constant 1 : index
    %1 = memref.load %arg3[%c0_1, %c1] : memref<2x8xf32, #tpu.memory_space<smem>>
    %c0_2 = arith.constant 0 : index
    %c2 = arith.constant 2 : index
    %2 = memref.load %arg3[%c0_2, %c2] : memref<2x8xf32, #tpu.memory_space<smem>>
    %c0_3 = arith.constant 0 : index
    %c3 = arith.constant 3 : index
    %3 = memref.load %arg3[%c0_3, %c3] : memref<2x8xf32, #tpu.memory_space<smem>>
    %c0_4 = arith.constant 0 : index
    %c4 = arith.constant 4 : index
    %4 = memref.load %arg3[%c0_4, %c4] : memref<2x8xf32, #tpu.memory_space<smem>>
    %c0_5 = arith.constant 0 : index
    %c5 = arith.constant 5 : index
    %5 = memref.load %arg3[%c0_5, %c5] : memref<2x8xf32, #tpu.memory_space<smem>>
    %c0_6 = arith.constant 0 : index
    %c6 = arith.constant 6 : index
    %6 = memref.load %arg3[%c0_6, %c6] : memref<2x8xf32, #tpu.memory_space<smem>>
    %c0_7 = arith.constant 0 : index
    %c7 = arith.constant 7 : index
    %7 = memref.load %arg3[%c0_7, %c7] : memref<2x8xf32, #tpu.memory_space<smem>>
    %c1_8 = arith.constant 1 : index
    %c0_9 = arith.constant 0 : index
    %8 = memref.load %arg3[%c1_8, %c0_9] : memref<2x8xf32, #tpu.memory_space<smem>>
    %c1_10 = arith.constant 1 : index
    %c1_11 = arith.constant 1 : index
    %9 = memref.load %arg3[%c1_10, %c1_11] : memref<2x8xf32, #tpu.memory_space<smem>>
    %c1_12 = arith.constant 1 : index
    %c2_13 = arith.constant 2 : index
    %10 = memref.load %arg3[%c1_12, %c2_13] : memref<2x8xf32, #tpu.memory_space<smem>>
    %c1_14 = arith.constant 1 : index
    %c3_15 = arith.constant 3 : index
    %11 = memref.load %arg3[%c1_14, %c3_15] : memref<2x8xf32, #tpu.memory_space<smem>>
    %c1_16 = arith.constant 1 : index
    %c4_17 = arith.constant 4 : index
    %12 = memref.load %arg3[%c1_16, %c4_17] : memref<2x8xf32, #tpu.memory_space<smem>>
    %c1_18 = arith.constant 1 : index
    %c5_19 = arith.constant 5 : index
    %13 = memref.load %arg3[%c1_18, %c5_19] : memref<2x8xf32, #tpu.memory_space<smem>>
    %c1_20 = arith.constant 1 : index
    %c6_21 = arith.constant 6 : index
    %14 = memref.load %arg3[%c1_20, %c6_21] : memref<2x8xf32, #tpu.memory_space<smem>>
    %c1_22 = arith.constant 1 : index
    %c7_23 = arith.constant 7 : index
    %15 = memref.load %arg3[%c1_22, %c7_23] : memref<2x8xf32, #tpu.memory_space<smem>>
    %c0_24 = arith.constant 0 : index
    %16 = memref.load %arg4[%c0_24] : memref<8xf32, #tpu.memory_space<smem>>
    %c1_25 = arith.constant 1 : index
    %17 = memref.load %arg4[%c1_25] : memref<8xf32, #tpu.memory_space<smem>>
    %c2_26 = arith.constant 2 : index
    %18 = memref.load %arg4[%c2_26] : memref<8xf32, #tpu.memory_space<smem>>
    %c3_27 = arith.constant 3 : index
    %19 = memref.load %arg4[%c3_27] : memref<8xf32, #tpu.memory_space<smem>>
    %c4_28 = arith.constant 4 : index
    %20 = memref.load %arg4[%c4_28] : memref<8xf32, #tpu.memory_space<smem>>
    %c5_29 = arith.constant 5 : index
    %21 = memref.load %arg4[%c5_29] : memref<8xf32, #tpu.memory_space<smem>>
    %c6_30 = arith.constant 6 : index
    %22 = memref.load %arg4[%c6_30] : memref<8xf32, #tpu.memory_space<smem>>
    %c7_31 = arith.constant 7 : index
    %23 = memref.load %arg4[%c7_31] : memref<8xf32, #tpu.memory_space<smem>>
    %c0_32 = arith.constant 0 : index
    %c0_33 = arith.constant 0 : index
    %24 = memref.load %arg5[%c0_32, %c0_33] : memref<8x8xf32, #tpu.memory_space<smem>>
    %c0_34 = arith.constant 0 : index
    %c1_35 = arith.constant 1 : index
    %25 = memref.load %arg5[%c0_34, %c1_35] : memref<8x8xf32, #tpu.memory_space<smem>>
    %c0_36 = arith.constant 0 : index
    %c2_37 = arith.constant 2 : index
    %26 = memref.load %arg5[%c0_36, %c2_37] : memref<8x8xf32, #tpu.memory_space<smem>>
    %c0_38 = arith.constant 0 : index
    %c3_39 = arith.constant 3 : index
    %27 = memref.load %arg5[%c0_38, %c3_39] : memref<8x8xf32, #tpu.memory_space<smem>>
    %c0_40 = arith.constant 0 : index
    %c4_41 = arith.constant 4 : index
    %28 = memref.load %arg5[%c0_40, %c4_41] : memref<8x8xf32, #tpu.memory_space<smem>>
    %c0_42 = arith.constant 0 : index
    %c5_43 = arith.constant 5 : index
    %29 = memref.load %arg5[%c0_42, %c5_43] : memref<8x8xf32, #tpu.memory_space<smem>>
    %c0_44 = arith.constant 0 : index
    %c6_45 = arith.constant 6 : index
    %30 = memref.load %arg5[%c0_44, %c6_45] : memref<8x8xf32, #tpu.memory_space<smem>>
    %c0_46 = arith.constant 0 : index
    %c7_47 = arith.constant 7 : index
    %31 = memref.load %arg5[%c0_46, %c7_47] : memref<8x8xf32, #tpu.memory_space<smem>>
    %c1_48 = arith.constant 1 : index
    %c0_49 = arith.constant 0 : index
    %32 = memref.load %arg5[%c1_48, %c0_49] : memref<8x8xf32, #tpu.memory_space<smem>>
    %c1_50 = arith.constant 1 : index
    %c1_51 = arith.constant 1 : index
    %33 = memref.load %arg5[%c1_50, %c1_51] : memref<8x8xf32, #tpu.memory_space<smem>>
    %c1_52 = arith.constant 1 : index
    %c2_53 = arith.constant 2 : index
    %34 = memref.load %arg5[%c1_52, %c2_53] : memref<8x8xf32, #tpu.memory_space<smem>>
    %c1_54 = arith.constant 1 : index
    %c3_55 = arith.constant 3 : index
    %35 = memref.load %arg5[%c1_54, %c3_55] : memref<8x8xf32, #tpu.memory_space<smem>>
    %c1_56 = arith.constant 1 : index
    %c4_57 = arith.constant 4 : index
    %36 = memref.load %arg5[%c1_56, %c4_57] : memref<8x8xf32, #tpu.memory_space<smem>>
    %c1_58 = arith.constant 1 : index
    %c5_59 = arith.constant 5 : index
    %37 = memref.load %arg5[%c1_58, %c5_59] : memref<8x8xf32, #tpu.memory_space<smem>>
    %c1_60 = arith.constant 1 : index
    %c6_61 = arith.constant 6 : index
    %38 = memref.load %arg5[%c1_60, %c6_61] : memref<8x8xf32, #tpu.memory_space<smem>>
    %c1_62 = arith.constant 1 : index
    %c7_63 = arith.constant 7 : index
    %39 = memref.load %arg5[%c1_62, %c7_63] : memref<8x8xf32, #tpu.memory_space<smem>>
    %c2_64 = arith.constant 2 : index
    %c0_65 = arith.constant 0 : index
    %40 = memref.load %arg5[%c2_64, %c0_65] : memref<8x8xf32, #tpu.memory_space<smem>>
    %c2_66 = arith.constant 2 : index
    %c1_67 = arith.constant 1 : index
    %41 = memref.load %arg5[%c2_66, %c1_67] : memref<8x8xf32, #tpu.memory_space<smem>>
    %c2_68 = arith.constant 2 : index
    %c2_69 = arith.constant 2 : index
    %42 = memref.load %arg5[%c2_68, %c2_69] : memref<8x8xf32, #tpu.memory_space<smem>>
    %c2_70 = arith.constant 2 : index
    %c3_71 = arith.constant 3 : index
    %43 = memref.load %arg5[%c2_70, %c3_71] : memref<8x8xf32, #tpu.memory_space<smem>>
    %c2_72 = arith.constant 2 : index
    %c4_73 = arith.constant 4 : index
    %44 = memref.load %arg5[%c2_72, %c4_73] : memref<8x8xf32, #tpu.memory_space<smem>>
    %c2_74 = arith.constant 2 : index
    %c5_75 = arith.constant 5 : index
    %45 = memref.load %arg5[%c2_74, %c5_75] : memref<8x8xf32, #tpu.memory_space<smem>>
    %c2_76 = arith.constant 2 : index
    %c6_77 = arith.constant 6 : index
    %46 = memref.load %arg5[%c2_76, %c6_77] : memref<8x8xf32, #tpu.memory_space<smem>>
    %c2_78 = arith.constant 2 : index
    %c7_79 = arith.constant 7 : index
    %47 = memref.load %arg5[%c2_78, %c7_79] : memref<8x8xf32, #tpu.memory_space<smem>>
    %c3_80 = arith.constant 3 : index
    %c0_81 = arith.constant 0 : index
    %48 = memref.load %arg5[%c3_80, %c0_81] : memref<8x8xf32, #tpu.memory_space<smem>>
    %c3_82 = arith.constant 3 : index
    %c1_83 = arith.constant 1 : index
    %49 = memref.load %arg5[%c3_82, %c1_83] : memref<8x8xf32, #tpu.memory_space<smem>>
    %c3_84 = arith.constant 3 : index
    %c2_85 = arith.constant 2 : index
    %50 = memref.load %arg5[%c3_84, %c2_85] : memref<8x8xf32, #tpu.memory_space<smem>>
    %c3_86 = arith.constant 3 : index
    %c3_87 = arith.constant 3 : index
    %51 = memref.load %arg5[%c3_86, %c3_87] : memref<8x8xf32, #tpu.memory_space<smem>>
    %c3_88 = arith.constant 3 : index
    %c4_89 = arith.constant 4 : index
    %52 = memref.load %arg5[%c3_88, %c4_89] : memref<8x8xf32, #tpu.memory_space<smem>>
    %c3_90 = arith.constant 3 : index
    %c5_91 = arith.constant 5 : index
    %53 = memref.load %arg5[%c3_90, %c5_91] : memref<8x8xf32, #tpu.memory_space<smem>>
    %c3_92 = arith.constant 3 : index
    %c6_93 = arith.constant 6 : index
    %54 = memref.load %arg5[%c3_92, %c6_93] : memref<8x8xf32, #tpu.memory_space<smem>>
    %c3_94 = arith.constant 3 : index
    %c7_95 = arith.constant 7 : index
    %55 = memref.load %arg5[%c3_94, %c7_95] : memref<8x8xf32, #tpu.memory_space<smem>>
    %c4_96 = arith.constant 4 : index
    %c0_97 = arith.constant 0 : index
    %56 = memref.load %arg5[%c4_96, %c0_97] : memref<8x8xf32, #tpu.memory_space<smem>>
    %c4_98 = arith.constant 4 : index
    %c1_99 = arith.constant 1 : index
    %57 = memref.load %arg5[%c4_98, %c1_99] : memref<8x8xf32, #tpu.memory_space<smem>>
    %c4_100 = arith.constant 4 : index
    %c2_101 = arith.constant 2 : index
    %58 = memref.load %arg5[%c4_100, %c2_101] : memref<8x8xf32, #tpu.memory_space<smem>>
    %c4_102 = arith.constant 4 : index
    %c3_103 = arith.constant 3 : index
    %59 = memref.load %arg5[%c4_102, %c3_103] : memref<8x8xf32, #tpu.memory_space<smem>>
    %c4_104 = arith.constant 4 : index
    %c4_105 = arith.constant 4 : index
    %60 = memref.load %arg5[%c4_104, %c4_105] : memref<8x8xf32, #tpu.memory_space<smem>>
    %c4_106 = arith.constant 4 : index
    %c5_107 = arith.constant 5 : index
    %61 = memref.load %arg5[%c4_106, %c5_107] : memref<8x8xf32, #tpu.memory_space<smem>>
    %c4_108 = arith.constant 4 : index
    %c6_109 = arith.constant 6 : index
    %62 = memref.load %arg5[%c4_108, %c6_109] : memref<8x8xf32, #tpu.memory_space<smem>>
    %c4_110 = arith.constant 4 : index
    %c7_111 = arith.constant 7 : index
    %63 = memref.load %arg5[%c4_110, %c7_111] : memref<8x8xf32, #tpu.memory_space<smem>>
    %c5_112 = arith.constant 5 : index
    %c0_113 = arith.constant 0 : index
    %64 = memref.load %arg5[%c5_112, %c0_113] : memref<8x8xf32, #tpu.memory_space<smem>>
    %c5_114 = arith.constant 5 : index
    %c1_115 = arith.constant 1 : index
    %65 = memref.load %arg5[%c5_114, %c1_115] : memref<8x8xf32, #tpu.memory_space<smem>>
    %c5_116 = arith.constant 5 : index
    %c2_117 = arith.constant 2 : index
    %66 = memref.load %arg5[%c5_116, %c2_117] : memref<8x8xf32, #tpu.memory_space<smem>>
    %c5_118 = arith.constant 5 : index
    %c3_119 = arith.constant 3 : index
    %67 = memref.load %arg5[%c5_118, %c3_119] : memref<8x8xf32, #tpu.memory_space<smem>>
    %c5_120 = arith.constant 5 : index
    %c4_121 = arith.constant 4 : index
    %68 = memref.load %arg5[%c5_120, %c4_121] : memref<8x8xf32, #tpu.memory_space<smem>>
    %c5_122 = arith.constant 5 : index
    %c5_123 = arith.constant 5 : index
    %69 = memref.load %arg5[%c5_122, %c5_123] : memref<8x8xf32, #tpu.memory_space<smem>>
    %c5_124 = arith.constant 5 : index
    %c6_125 = arith.constant 6 : index
    %70 = memref.load %arg5[%c5_124, %c6_125] : memref<8x8xf32, #tpu.memory_space<smem>>
    %c5_126 = arith.constant 5 : index
    %c7_127 = arith.constant 7 : index
    %71 = memref.load %arg5[%c5_126, %c7_127] : memref<8x8xf32, #tpu.memory_space<smem>>
    %c6_128 = arith.constant 6 : index
    %c0_129 = arith.constant 0 : index
    %72 = memref.load %arg5[%c6_128, %c0_129] : memref<8x8xf32, #tpu.memory_space<smem>>
    %c6_130 = arith.constant 6 : index
    %c1_131 = arith.constant 1 : index
    %73 = memref.load %arg5[%c6_130, %c1_131] : memref<8x8xf32, #tpu.memory_space<smem>>
    %c6_132 = arith.constant 6 : index
    %c2_133 = arith.constant 2 : index
    %74 = memref.load %arg5[%c6_132, %c2_133] : memref<8x8xf32, #tpu.memory_space<smem>>
    %c6_134 = arith.constant 6 : index
    %c3_135 = arith.constant 3 : index
    %75 = memref.load %arg5[%c6_134, %c3_135] : memref<8x8xf32, #tpu.memory_space<smem>>
    %c6_136 = arith.constant 6 : index
    %c4_137 = arith.constant 4 : index
    %76 = memref.load %arg5[%c6_136, %c4_137] : memref<8x8xf32, #tpu.memory_space<smem>>
    %c6_138 = arith.constant 6 : index
    %c5_139 = arith.constant 5 : index
    %77 = memref.load %arg5[%c6_138, %c5_139] : memref<8x8xf32, #tpu.memory_space<smem>>
    %c6_140 = arith.constant 6 : index
    %c6_141 = arith.constant 6 : index
    %78 = memref.load %arg5[%c6_140, %c6_141] : memref<8x8xf32, #tpu.memory_space<smem>>
    %c6_142 = arith.constant 6 : index
    %c7_143 = arith.constant 7 : index
    %79 = memref.load %arg5[%c6_142, %c7_143] : memref<8x8xf32, #tpu.memory_space<smem>>
    %c7_144 = arith.constant 7 : index
    %c0_145 = arith.constant 0 : index
    %80 = memref.load %arg5[%c7_144, %c0_145] : memref<8x8xf32, #tpu.memory_space<smem>>
    %c7_146 = arith.constant 7 : index
    %c1_147 = arith.constant 1 : index
    %81 = memref.load %arg5[%c7_146, %c1_147] : memref<8x8xf32, #tpu.memory_space<smem>>
    %c7_148 = arith.constant 7 : index
    %c2_149 = arith.constant 2 : index
    %82 = memref.load %arg5[%c7_148, %c2_149] : memref<8x8xf32, #tpu.memory_space<smem>>
    %c7_150 = arith.constant 7 : index
    %c3_151 = arith.constant 3 : index
    %83 = memref.load %arg5[%c7_150, %c3_151] : memref<8x8xf32, #tpu.memory_space<smem>>
    %c7_152 = arith.constant 7 : index
    %c4_153 = arith.constant 4 : index
    %84 = memref.load %arg5[%c7_152, %c4_153] : memref<8x8xf32, #tpu.memory_space<smem>>
    %c7_154 = arith.constant 7 : index
    %c5_155 = arith.constant 5 : index
    %85 = memref.load %arg5[%c7_154, %c5_155] : memref<8x8xf32, #tpu.memory_space<smem>>
    %c7_156 = arith.constant 7 : index
    %c6_157 = arith.constant 6 : index
    %86 = memref.load %arg5[%c7_156, %c6_157] : memref<8x8xf32, #tpu.memory_space<smem>>
    %c7_158 = arith.constant 7 : index
    %c7_159 = arith.constant 7 : index
    %87 = memref.load %arg5[%c7_158, %c7_159] : memref<8x8xf32, #tpu.memory_space<smem>>
    %c0_160 = arith.constant 0 : index
    %88 = memref.load %arg6[%c0_160] : memref<8xf32, #tpu.memory_space<smem>>
    %c1_161 = arith.constant 1 : index
    %89 = memref.load %arg6[%c1_161] : memref<8xf32, #tpu.memory_space<smem>>
    %c2_162 = arith.constant 2 : index
    %90 = memref.load %arg6[%c2_162] : memref<8xf32, #tpu.memory_space<smem>>
    %c3_163 = arith.constant 3 : index
    %91 = memref.load %arg6[%c3_163] : memref<8xf32, #tpu.memory_space<smem>>
    %c4_164 = arith.constant 4 : index
    %92 = memref.load %arg6[%c4_164] : memref<8xf32, #tpu.memory_space<smem>>
    %c5_165 = arith.constant 5 : index
    %93 = memref.load %arg6[%c5_165] : memref<8xf32, #tpu.memory_space<smem>>
    %c6_166 = arith.constant 6 : index
    %94 = memref.load %arg6[%c6_166] : memref<8xf32, #tpu.memory_space<smem>>
    %c7_167 = arith.constant 7 : index
    %95 = memref.load %arg6[%c7_167] : memref<8xf32, #tpu.memory_space<smem>>
    %c0_168 = arith.constant 0 : index
    %c0_169 = arith.constant 0 : index
    %96 = memref.load %arg7[%c0_168, %c0_169] : memref<8x1xf32, #tpu.memory_space<smem>>
    %c1_170 = arith.constant 1 : index
    %c0_171 = arith.constant 0 : index
    %97 = memref.load %arg7[%c1_170, %c0_171] : memref<8x1xf32, #tpu.memory_space<smem>>
    %c2_172 = arith.constant 2 : index
    %c0_173 = arith.constant 0 : index
    %98 = memref.load %arg7[%c2_172, %c0_173] : memref<8x1xf32, #tpu.memory_space<smem>>
    %c3_174 = arith.constant 3 : index
    %c0_175 = arith.constant 0 : index
    %99 = memref.load %arg7[%c3_174, %c0_175] : memref<8x1xf32, #tpu.memory_space<smem>>
    %c4_176 = arith.constant 4 : index
    %c0_177 = arith.constant 0 : index
    %100 = memref.load %arg7[%c4_176, %c0_177] : memref<8x1xf32, #tpu.memory_space<smem>>
    %c5_178 = arith.constant 5 : index
    %c0_179 = arith.constant 0 : index
    %101 = memref.load %arg7[%c5_178, %c0_179] : memref<8x1xf32, #tpu.memory_space<smem>>
    %c6_180 = arith.constant 6 : index
    %c0_181 = arith.constant 0 : index
    %102 = memref.load %arg7[%c6_180, %c0_181] : memref<8x1xf32, #tpu.memory_space<smem>>
    %c7_182 = arith.constant 7 : index
    %c0_183 = arith.constant 0 : index
    %103 = memref.load %arg7[%c7_182, %c0_183] : memref<8x1xf32, #tpu.memory_space<smem>>
    %c0_184 = arith.constant 0 : index
    %104 = memref.load %arg8[%c0_184] : memref<1xf32, #tpu.memory_space<smem>>
    %c0_185 = arith.constant 0 : index
    %c0_186 = arith.constant 0 : index
    %c0_187 = arith.constant 0 : index
    %c0_188 = arith.constant 0 : index
    %105 = vector.load %arg2[%c0_185, %c0_186, %c0_187, %c0_188] : memref<1x2x2x128xf32, #tpu.memory_space<vmem>>, vector<1x1x2x128xf32>
    %106 = vector.shape_cast %105 : vector<1x1x2x128xf32> to vector<2x128xf32>
    %c0_189 = arith.constant 0 : index
    %c1_190 = arith.constant 1 : index
    %c0_191 = arith.constant 0 : index
    %c0_192 = arith.constant 0 : index
    %107 = vector.load %arg2[%c0_189, %c1_190, %c0_191, %c0_192] : memref<1x2x2x128xf32, #tpu.memory_space<vmem>>, vector<1x1x2x128xf32>
    %108 = vector.shape_cast %107 : vector<1x1x2x128xf32> to vector<2x128xf32>
    %109 = vector.broadcast %0 : f32 to vector<2x128xf32>
    %110 = arith.mulf %109, %106 : vector<2x128xf32>
    %111 = vector.broadcast %8 : f32 to vector<2x128xf32>
    %112 = arith.mulf %111, %108 : vector<2x128xf32>
    %113 = arith.addf %110, %112 : vector<2x128xf32>
    %114 = vector.broadcast %16 : f32 to vector<2x128xf32>
    %115 = arith.addf %113, %114 : vector<2x128xf32>
    %cst = arith.constant 0.000000e+00 : f32
    %116 = vector.broadcast %cst : f32 to vector<2x128xf32>
    %117 = arith.maximumf %115, %116 : vector<2x128xf32>
    %118 = vector.broadcast %1 : f32 to vector<2x128xf32>
    %119 = arith.mulf %118, %106 : vector<2x128xf32>
    %120 = vector.broadcast %9 : f32 to vector<2x128xf32>
    %121 = arith.mulf %120, %108 : vector<2x128xf32>
    %122 = arith.addf %119, %121 : vector<2x128xf32>
    %123 = vector.broadcast %17 : f32 to vector<2x128xf32>
    %124 = arith.addf %122, %123 : vector<2x128xf32>
    %cst_193 = arith.constant 0.000000e+00 : f32
    %125 = vector.broadcast %cst_193 : f32 to vector<2x128xf32>
    %126 = arith.maximumf %124, %125 : vector<2x128xf32>
    %127 = vector.broadcast %2 : f32 to vector<2x128xf32>
    %128 = arith.mulf %127, %106 : vector<2x128xf32>
    %129 = vector.broadcast %10 : f32 to vector<2x128xf32>
    %130 = arith.mulf %129, %108 : vector<2x128xf32>
    %131 = arith.addf %128, %130 : vector<2x128xf32>
    %132 = vector.broadcast %18 : f32 to vector<2x128xf32>
    %133 = arith.addf %131, %132 : vector<2x128xf32>
    %cst_194 = arith.constant 0.000000e+00 : f32
    %134 = vector.broadcast %cst_194 : f32 to vector<2x128xf32>
    %135 = arith.maximumf %133, %134 : vector<2x128xf32>
    %136 = vector.broadcast %3 : f32 to vector<2x128xf32>
    %137 = arith.mulf %136, %106 : vector<2x128xf32>
    %138 = vector.broadcast %11 : f32 to vector<2x128xf32>
    %139 = arith.mulf %138, %108 : vector<2x128xf32>
    %140 = arith.addf %137, %139 : vector<2x128xf32>
    %141 = vector.broadcast %19 : f32 to vector<2x128xf32>
    %142 = arith.addf %140, %141 : vector<2x128xf32>
    %cst_195 = arith.constant 0.000000e+00 : f32
    %143 = vector.broadcast %cst_195 : f32 to vector<2x128xf32>
    %144 = arith.maximumf %142, %143 : vector<2x128xf32>
    %145 = vector.broadcast %4 : f32 to vector<2x128xf32>
    %146 = arith.mulf %145, %106 : vector<2x128xf32>
    %147 = vector.broadcast %12 : f32 to vector<2x128xf32>
    %148 = arith.mulf %147, %108 : vector<2x128xf32>
    %149 = arith.addf %146, %148 : vector<2x128xf32>
    %150 = vector.broadcast %20 : f32 to vector<2x128xf32>
    %151 = arith.addf %149, %150 : vector<2x128xf32>
    %cst_196 = arith.constant 0.000000e+00 : f32
    %152 = vector.broadcast %cst_196 : f32 to vector<2x128xf32>
    %153 = arith.maximumf %151, %152 : vector<2x128xf32>
    %154 = vector.broadcast %5 : f32 to vector<2x128xf32>
    %155 = arith.mulf %154, %106 : vector<2x128xf32>
    %156 = vector.broadcast %13 : f32 to vector<2x128xf32>
    %157 = arith.mulf %156, %108 : vector<2x128xf32>
    %158 = arith.addf %155, %157 : vector<2x128xf32>
    %159 = vector.broadcast %21 : f32 to vector<2x128xf32>
    %160 = arith.addf %158, %159 : vector<2x128xf32>
    %cst_197 = arith.constant 0.000000e+00 : f32
    %161 = vector.broadcast %cst_197 : f32 to vector<2x128xf32>
    %162 = arith.maximumf %160, %161 : vector<2x128xf32>
    %163 = vector.broadcast %6 : f32 to vector<2x128xf32>
    %164 = arith.mulf %163, %106 : vector<2x128xf32>
    %165 = vector.broadcast %14 : f32 to vector<2x128xf32>
    %166 = arith.mulf %165, %108 : vector<2x128xf32>
    %167 = arith.addf %164, %166 : vector<2x128xf32>
    %168 = vector.broadcast %22 : f32 to vector<2x128xf32>
    %169 = arith.addf %167, %168 : vector<2x128xf32>
    %cst_198 = arith.constant 0.000000e+00 : f32
    %170 = vector.broadcast %cst_198 : f32 to vector<2x128xf32>
    %171 = arith.maximumf %169, %170 : vector<2x128xf32>
    %172 = vector.broadcast %7 : f32 to vector<2x128xf32>
    %173 = arith.mulf %172, %106 : vector<2x128xf32>
    %174 = vector.broadcast %15 : f32 to vector<2x128xf32>
    %175 = arith.mulf %174, %108 : vector<2x128xf32>
    %176 = arith.addf %173, %175 : vector<2x128xf32>
    %177 = vector.broadcast %23 : f32 to vector<2x128xf32>
    %178 = arith.addf %176, %177 : vector<2x128xf32>
    %cst_199 = arith.constant 0.000000e+00 : f32
    %179 = vector.broadcast %cst_199 : f32 to vector<2x128xf32>
    %180 = arith.maximumf %178, %179 : vector<2x128xf32>
    %181 = vector.broadcast %24 : f32 to vector<2x128xf32>
    %182 = arith.mulf %117, %181 : vector<2x128xf32>
    %183 = vector.broadcast %32 : f32 to vector<2x128xf32>
    %184 = arith.mulf %126, %183 : vector<2x128xf32>
    %185 = arith.addf %182, %184 : vector<2x128xf32>
    %186 = vector.broadcast %40 : f32 to vector<2x128xf32>
    %187 = arith.mulf %135, %186 : vector<2x128xf32>
    %188 = arith.addf %185, %187 : vector<2x128xf32>
    %189 = vector.broadcast %48 : f32 to vector<2x128xf32>
    %190 = arith.mulf %144, %189 : vector<2x128xf32>
    %191 = arith.addf %188, %190 : vector<2x128xf32>
    %192 = vector.broadcast %56 : f32 to vector<2x128xf32>
    %193 = arith.mulf %153, %192 : vector<2x128xf32>
    %194 = arith.addf %191, %193 : vector<2x128xf32>
    %195 = vector.broadcast %64 : f32 to vector<2x128xf32>
    %196 = arith.mulf %162, %195 : vector<2x128xf32>
    %197 = arith.addf %194, %196 : vector<2x128xf32>
    %198 = vector.broadcast %72 : f32 to vector<2x128xf32>
    %199 = arith.mulf %171, %198 : vector<2x128xf32>
    %200 = arith.addf %197, %199 : vector<2x128xf32>
    %201 = vector.broadcast %80 : f32 to vector<2x128xf32>
    %202 = arith.mulf %180, %201 : vector<2x128xf32>
    %203 = arith.addf %200, %202 : vector<2x128xf32>
    %204 = vector.broadcast %88 : f32 to vector<2x128xf32>
    %205 = arith.addf %203, %204 : vector<2x128xf32>
    %cst_200 = arith.constant 0.000000e+00 : f32
    %206 = vector.broadcast %cst_200 : f32 to vector<2x128xf32>
    %207 = arith.maximumf %205, %206 : vector<2x128xf32>
    %208 = vector.broadcast %25 : f32 to vector<2x128xf32>
    %209 = arith.mulf %117, %208 : vector<2x128xf32>
    %210 = vector.broadcast %33 : f32 to vector<2x128xf32>
    %211 = arith.mulf %126, %210 : vector<2x128xf32>
    %212 = arith.addf %209, %211 : vector<2x128xf32>
    %213 = vector.broadcast %41 : f32 to vector<2x128xf32>
    %214 = arith.mulf %135, %213 : vector<2x128xf32>
    %215 = arith.addf %212, %214 : vector<2x128xf32>
    %216 = vector.broadcast %49 : f32 to vector<2x128xf32>
    %217 = arith.mulf %144, %216 : vector<2x128xf32>
    %218 = arith.addf %215, %217 : vector<2x128xf32>
    %219 = vector.broadcast %57 : f32 to vector<2x128xf32>
    %220 = arith.mulf %153, %219 : vector<2x128xf32>
    %221 = arith.addf %218, %220 : vector<2x128xf32>
    %222 = vector.broadcast %65 : f32 to vector<2x128xf32>
    %223 = arith.mulf %162, %222 : vector<2x128xf32>
    %224 = arith.addf %221, %223 : vector<2x128xf32>
    %225 = vector.broadcast %73 : f32 to vector<2x128xf32>
    %226 = arith.mulf %171, %225 : vector<2x128xf32>
    %227 = arith.addf %224, %226 : vector<2x128xf32>
    %228 = vector.broadcast %81 : f32 to vector<2x128xf32>
    %229 = arith.mulf %180, %228 : vector<2x128xf32>
    %230 = arith.addf %227, %229 : vector<2x128xf32>
    %231 = vector.broadcast %89 : f32 to vector<2x128xf32>
    %232 = arith.addf %230, %231 : vector<2x128xf32>
    %cst_201 = arith.constant 0.000000e+00 : f32
    %233 = vector.broadcast %cst_201 : f32 to vector<2x128xf32>
    %234 = arith.maximumf %232, %233 : vector<2x128xf32>
    %235 = vector.broadcast %26 : f32 to vector<2x128xf32>
    %236 = arith.mulf %117, %235 : vector<2x128xf32>
    %237 = vector.broadcast %34 : f32 to vector<2x128xf32>
    %238 = arith.mulf %126, %237 : vector<2x128xf32>
    %239 = arith.addf %236, %238 : vector<2x128xf32>
    %240 = vector.broadcast %42 : f32 to vector<2x128xf32>
    %241 = arith.mulf %135, %240 : vector<2x128xf32>
    %242 = arith.addf %239, %241 : vector<2x128xf32>
    %243 = vector.broadcast %50 : f32 to vector<2x128xf32>
    %244 = arith.mulf %144, %243 : vector<2x128xf32>
    %245 = arith.addf %242, %244 : vector<2x128xf32>
    %246 = vector.broadcast %58 : f32 to vector<2x128xf32>
    %247 = arith.mulf %153, %246 : vector<2x128xf32>
    %248 = arith.addf %245, %247 : vector<2x128xf32>
    %249 = vector.broadcast %66 : f32 to vector<2x128xf32>
    %250 = arith.mulf %162, %249 : vector<2x128xf32>
    %251 = arith.addf %248, %250 : vector<2x128xf32>
    %252 = vector.broadcast %74 : f32 to vector<2x128xf32>
    %253 = arith.mulf %171, %252 : vector<2x128xf32>
    %254 = arith.addf %251, %253 : vector<2x128xf32>
    %255 = vector.broadcast %82 : f32 to vector<2x128xf32>
    %256 = arith.mulf %180, %255 : vector<2x128xf32>
    %257 = arith.addf %254, %256 : vector<2x128xf32>
    %258 = vector.broadcast %90 : f32 to vector<2x128xf32>
    %259 = arith.addf %257, %258 : vector<2x128xf32>
    %cst_202 = arith.constant 0.000000e+00 : f32
    %260 = vector.broadcast %cst_202 : f32 to vector<2x128xf32>
    %261 = arith.maximumf %259, %260 : vector<2x128xf32>
    %262 = vector.broadcast %27 : f32 to vector<2x128xf32>
    %263 = arith.mulf %117, %262 : vector<2x128xf32>
    %264 = vector.broadcast %35 : f32 to vector<2x128xf32>
    %265 = arith.mulf %126, %264 : vector<2x128xf32>
    %266 = arith.addf %263, %265 : vector<2x128xf32>
    %267 = vector.broadcast %43 : f32 to vector<2x128xf32>
    %268 = arith.mulf %135, %267 : vector<2x128xf32>
    %269 = arith.addf %266, %268 : vector<2x128xf32>
    %270 = vector.broadcast %51 : f32 to vector<2x128xf32>
    %271 = arith.mulf %144, %270 : vector<2x128xf32>
    %272 = arith.addf %269, %271 : vector<2x128xf32>
    %273 = vector.broadcast %59 : f32 to vector<2x128xf32>
    %274 = arith.mulf %153, %273 : vector<2x128xf32>
    %275 = arith.addf %272, %274 : vector<2x128xf32>
    %276 = vector.broadcast %67 : f32 to vector<2x128xf32>
    %277 = arith.mulf %162, %276 : vector<2x128xf32>
    %278 = arith.addf %275, %277 : vector<2x128xf32>
    %279 = vector.broadcast %75 : f32 to vector<2x128xf32>
    %280 = arith.mulf %171, %279 : vector<2x128xf32>
    %281 = arith.addf %278, %280 : vector<2x128xf32>
    %282 = vector.broadcast %83 : f32 to vector<2x128xf32>
    %283 = arith.mulf %180, %282 : vector<2x128xf32>
    %284 = arith.addf %281, %283 : vector<2x128xf32>
    %285 = vector.broadcast %91 : f32 to vector<2x128xf32>
    %286 = arith.addf %284, %285 : vector<2x128xf32>
    %cst_203 = arith.constant 0.000000e+00 : f32
    %287 = vector.broadcast %cst_203 : f32 to vector<2x128xf32>
    %288 = arith.maximumf %286, %287 : vector<2x128xf32>
    %289 = vector.broadcast %28 : f32 to vector<2x128xf32>
    %290 = arith.mulf %117, %289 : vector<2x128xf32>
    %291 = vector.broadcast %36 : f32 to vector<2x128xf32>
    %292 = arith.mulf %126, %291 : vector<2x128xf32>
    %293 = arith.addf %290, %292 : vector<2x128xf32>
    %294 = vector.broadcast %44 : f32 to vector<2x128xf32>
    %295 = arith.mulf %135, %294 : vector<2x128xf32>
    %296 = arith.addf %293, %295 : vector<2x128xf32>
    %297 = vector.broadcast %52 : f32 to vector<2x128xf32>
    %298 = arith.mulf %144, %297 : vector<2x128xf32>
    %299 = arith.addf %296, %298 : vector<2x128xf32>
    %300 = vector.broadcast %60 : f32 to vector<2x128xf32>
    %301 = arith.mulf %153, %300 : vector<2x128xf32>
    %302 = arith.addf %299, %301 : vector<2x128xf32>
    %303 = vector.broadcast %68 : f32 to vector<2x128xf32>
    %304 = arith.mulf %162, %303 : vector<2x128xf32>
    %305 = arith.addf %302, %304 : vector<2x128xf32>
    %306 = vector.broadcast %76 : f32 to vector<2x128xf32>
    %307 = arith.mulf %171, %306 : vector<2x128xf32>
    %308 = arith.addf %305, %307 : vector<2x128xf32>
    %309 = vector.broadcast %84 : f32 to vector<2x128xf32>
    %310 = arith.mulf %180, %309 : vector<2x128xf32>
    %311 = arith.addf %308, %310 : vector<2x128xf32>
    %312 = vector.broadcast %92 : f32 to vector<2x128xf32>
    %313 = arith.addf %311, %312 : vector<2x128xf32>
    %cst_204 = arith.constant 0.000000e+00 : f32
    %314 = vector.broadcast %cst_204 : f32 to vector<2x128xf32>
    %315 = arith.maximumf %313, %314 : vector<2x128xf32>
    %316 = vector.broadcast %29 : f32 to vector<2x128xf32>
    %317 = arith.mulf %117, %316 : vector<2x128xf32>
    %318 = vector.broadcast %37 : f32 to vector<2x128xf32>
    %319 = arith.mulf %126, %318 : vector<2x128xf32>
    %320 = arith.addf %317, %319 : vector<2x128xf32>
    %321 = vector.broadcast %45 : f32 to vector<2x128xf32>
    %322 = arith.mulf %135, %321 : vector<2x128xf32>
    %323 = arith.addf %320, %322 : vector<2x128xf32>
    %324 = vector.broadcast %53 : f32 to vector<2x128xf32>
    %325 = arith.mulf %144, %324 : vector<2x128xf32>
    %326 = arith.addf %323, %325 : vector<2x128xf32>
    %327 = vector.broadcast %61 : f32 to vector<2x128xf32>
    %328 = arith.mulf %153, %327 : vector<2x128xf32>
    %329 = arith.addf %326, %328 : vector<2x128xf32>
    %330 = vector.broadcast %69 : f32 to vector<2x128xf32>
    %331 = arith.mulf %162, %330 : vector<2x128xf32>
    %332 = arith.addf %329, %331 : vector<2x128xf32>
    %333 = vector.broadcast %77 : f32 to vector<2x128xf32>
    %334 = arith.mulf %171, %333 : vector<2x128xf32>
    %335 = arith.addf %332, %334 : vector<2x128xf32>
    %336 = vector.broadcast %85 : f32 to vector<2x128xf32>
    %337 = arith.mulf %180, %336 : vector<2x128xf32>
    %338 = arith.addf %335, %337 : vector<2x128xf32>
    %339 = vector.broadcast %93 : f32 to vector<2x128xf32>
    %340 = arith.addf %338, %339 : vector<2x128xf32>
    %cst_205 = arith.constant 0.000000e+00 : f32
    %341 = vector.broadcast %cst_205 : f32 to vector<2x128xf32>
    %342 = arith.maximumf %340, %341 : vector<2x128xf32>
    %343 = vector.broadcast %30 : f32 to vector<2x128xf32>
    %344 = arith.mulf %117, %343 : vector<2x128xf32>
    %345 = vector.broadcast %38 : f32 to vector<2x128xf32>
    %346 = arith.mulf %126, %345 : vector<2x128xf32>
    %347 = arith.addf %344, %346 : vector<2x128xf32>
    %348 = vector.broadcast %46 : f32 to vector<2x128xf32>
    %349 = arith.mulf %135, %348 : vector<2x128xf32>
    %350 = arith.addf %347, %349 : vector<2x128xf32>
    %351 = vector.broadcast %54 : f32 to vector<2x128xf32>
    %352 = arith.mulf %144, %351 : vector<2x128xf32>
    %353 = arith.addf %350, %352 : vector<2x128xf32>
    %354 = vector.broadcast %62 : f32 to vector<2x128xf32>
    %355 = arith.mulf %153, %354 : vector<2x128xf32>
    %356 = arith.addf %353, %355 : vector<2x128xf32>
    %357 = vector.broadcast %70 : f32 to vector<2x128xf32>
    %358 = arith.mulf %162, %357 : vector<2x128xf32>
    %359 = arith.addf %356, %358 : vector<2x128xf32>
    %360 = vector.broadcast %78 : f32 to vector<2x128xf32>
    %361 = arith.mulf %171, %360 : vector<2x128xf32>
    %362 = arith.addf %359, %361 : vector<2x128xf32>
    %363 = vector.broadcast %86 : f32 to vector<2x128xf32>
    %364 = arith.mulf %180, %363 : vector<2x128xf32>
    %365 = arith.addf %362, %364 : vector<2x128xf32>
    %366 = vector.broadcast %94 : f32 to vector<2x128xf32>
    %367 = arith.addf %365, %366 : vector<2x128xf32>
    %cst_206 = arith.constant 0.000000e+00 : f32
    %368 = vector.broadcast %cst_206 : f32 to vector<2x128xf32>
    %369 = arith.maximumf %367, %368 : vector<2x128xf32>
    %370 = vector.broadcast %31 : f32 to vector<2x128xf32>
    %371 = arith.mulf %117, %370 : vector<2x128xf32>
    %372 = vector.broadcast %39 : f32 to vector<2x128xf32>
    %373 = arith.mulf %126, %372 : vector<2x128xf32>
    %374 = arith.addf %371, %373 : vector<2x128xf32>
    %375 = vector.broadcast %47 : f32 to vector<2x128xf32>
    %376 = arith.mulf %135, %375 : vector<2x128xf32>
    %377 = arith.addf %374, %376 : vector<2x128xf32>
    %378 = vector.broadcast %55 : f32 to vector<2x128xf32>
    %379 = arith.mulf %144, %378 : vector<2x128xf32>
    %380 = arith.addf %377, %379 : vector<2x128xf32>
    %381 = vector.broadcast %63 : f32 to vector<2x128xf32>
    %382 = arith.mulf %153, %381 : vector<2x128xf32>
    %383 = arith.addf %380, %382 : vector<2x128xf32>
    %384 = vector.broadcast %71 : f32 to vector<2x128xf32>
    %385 = arith.mulf %162, %384 : vector<2x128xf32>
    %386 = arith.addf %383, %385 : vector<2x128xf32>
    %387 = vector.broadcast %79 : f32 to vector<2x128xf32>
    %388 = arith.mulf %171, %387 : vector<2x128xf32>
    %389 = arith.addf %386, %388 : vector<2x128xf32>
    %390 = vector.broadcast %87 : f32 to vector<2x128xf32>
    %391 = arith.mulf %180, %390 : vector<2x128xf32>
    %392 = arith.addf %389, %391 : vector<2x128xf32>
    %393 = vector.broadcast %95 : f32 to vector<2x128xf32>
    %394 = arith.addf %392, %393 : vector<2x128xf32>
    %cst_207 = arith.constant 0.000000e+00 : f32
    %395 = vector.broadcast %cst_207 : f32 to vector<2x128xf32>
    %396 = arith.maximumf %394, %395 : vector<2x128xf32>
    %397 = vector.broadcast %96 : f32 to vector<2x128xf32>
    %398 = arith.mulf %207, %397 : vector<2x128xf32>
    %399 = vector.broadcast %97 : f32 to vector<2x128xf32>
    %400 = arith.mulf %234, %399 : vector<2x128xf32>
    %401 = arith.addf %398, %400 : vector<2x128xf32>
    %402 = vector.broadcast %98 : f32 to vector<2x128xf32>
    %403 = arith.mulf %261, %402 : vector<2x128xf32>
    %404 = arith.addf %401, %403 : vector<2x128xf32>
    %405 = vector.broadcast %99 : f32 to vector<2x128xf32>
    %406 = arith.mulf %288, %405 : vector<2x128xf32>
    %407 = arith.addf %404, %406 : vector<2x128xf32>
    %408 = vector.broadcast %100 : f32 to vector<2x128xf32>
    %409 = arith.mulf %315, %408 : vector<2x128xf32>
    %410 = arith.addf %407, %409 : vector<2x128xf32>
    %411 = vector.broadcast %101 : f32 to vector<2x128xf32>
    %412 = arith.mulf %342, %411 : vector<2x128xf32>
    %413 = arith.addf %410, %412 : vector<2x128xf32>
    %414 = vector.broadcast %102 : f32 to vector<2x128xf32>
    %415 = arith.mulf %369, %414 : vector<2x128xf32>
    %416 = arith.addf %413, %415 : vector<2x128xf32>
    %417 = vector.broadcast %103 : f32 to vector<2x128xf32>
    %418 = arith.mulf %396, %417 : vector<2x128xf32>
    %419 = arith.addf %416, %418 : vector<2x128xf32>
    %420 = vector.broadcast %104 : f32 to vector<2x128xf32>
    %421 = arith.addf %419, %420 : vector<2x128xf32>
    %c0_208 = arith.constant 0 : index
    %c0_209 = arith.constant 0 : index
    %c0_210 = arith.constant 0 : index
    %c0_211 = arith.constant 0 : index
    %422 = vector.load %arg9[%c0_208, %c0_209, %c0_210, %c0_211] : memref<1x1x2x128xf32, #tpu.memory_space<vmem>>, vector<1x1x2x128xf32>
    %423 = vector.shape_cast %422 : vector<1x1x2x128xf32> to vector<2x128xf32>
    %424 = vector.shape_cast %421 : vector<2x128xf32> to vector<1x1x2x128xf32>
    tpu.vector_store %arg9[%c0_208, %c0_209, %c0_210, %c0_211], %424 {strides = array<i32>} : memref<1x1x2x128xf32, #tpu.memory_space<vmem>>, vector<1x1x2x128xf32>,
    return
  }
  func.func @transform_0(%arg0: i32, %arg1: i32) -> (i32, i32, i32, i32) {
    %c0_i32 = arith.constant 0 : i32
    %c0_i32_0 = arith.constant 0 : i32
    %c0_i32_1 = arith.constant 0 : i32
    return %arg0, %c0_i32, %arg1, %c0_i32_0 : i32, i32, i32, i32
  }
  func.func @transform_1(%arg0: i32, %arg1: i32) -> (i32, i32) {
    %c0_i32 = arith.constant 0 : i32
    %c0_i32_0 = arith.constant 0 : i32
    %c0_i32_1 = arith.constant 0 : i32
    return %c0_i32, %c0_i32_0 : i32, i32
  }
  func.func @transform_2(%arg0: i32, %arg1: i32) -> i32 {
    %c0_i32 = arith.constant 0 : i32
    %c0_i32_0 = arith.constant 0 : i32
    return %c0_i32 : i32
  }
  func.func @transform_3(%arg0: i32, %arg1: i32) -> (i32, i32) {
    %c0_i32 = arith.constant 0 : i32
    %c0_i32_0 = arith.constant 0 : i32
    %c0_i32_1 = arith.constant 0 : i32
    return %c0_i32, %c0_i32_0 : i32, i32
  }
  func.func @transform_4(%arg0: i32, %arg1: i32) -> i32 {
    %c0_i32 = arith.constant 0 : i32
    %c0_i32_0 = arith.constant 0 : i32
    return %c0_i32 : i32
  }
  func.func @transform_5(%arg0: i32, %arg1: i32) -> (i32, i32) {
    %c0_i32 = arith.constant 0 : i32
    %c0_i32_0 = arith.constant 0 : i32
    %c0_i32_1 = arith.constant 0 : i32
    return %c0_i32, %c0_i32_0 : i32, i32
  }
  func.func @transform_6(%arg0: i32, %arg1: i32) -> i32 {
    %c0_i32 = arith.constant 0 : i32
    %c0_i32_0 = arith.constant 0 : i32
    return %c0_i32 : i32
  }
  func.func @transform_7(%arg0: i32, %arg1: i32) -> (i32, i32, i32, i32) {
    %c0_i32 = arith.constant 0 : i32
    %c0_i32_0 = arith.constant 0 : i32
    %c0_i32_1 = arith.constant 0 : i32
    return %arg0, %c0_i32, %arg1, %c0_i32_0 : i32, i32, i32, i32
  }
}

</mosaic_0001>

<llo_original>
// kernel: tpu_custom_call.1
$region0: #{tpu_custom_call.1}
  #allocation0 [shape = 'u32[]', space=smem, size = 0x4, offset = 0x4, fixed_abs, tag = 'smem constant byte address 0x4 - core index']
  #allocation1 [shape = 'u32[144,128]{1,0:T(1,128)}', space=vmem, size = 0x12000, scoped, tag = 'internal scratch']
  #allocation2 [shape = 'f32[1]{0:T(128)S(6)}', space=smem, size = 0x200, scoped, tag = 'scoped memory for tpu_custom_call.1']
  %s0 = inlined_call_operand.vmem [shape: f32[2,2,2,128], index: 0, kind: input, shape index: {}]
  %s1 = inlined_call_operand.hbm [shape: f32[2,8], index: 1, kind: input, shape index: {}]
  %s2 = inlined_call_operand.vmem [shape: f32[8], index: 2, kind: input, shape index: {}]
  %s3 = inlined_call_operand.vmem [shape: f32[8,8], index: 3, kind: input, shape index: {}]
  %s4 = inlined_call_operand.vmem [shape: f32[8], index: 4, kind: input, shape index: {}]
  %s5 = inlined_call_operand.vmem [shape: f32[8,1], index: 5, kind: input, shape index: {}]
  %s6 = inlined_call_operand.<no memory space> [shape: f32[1], index: 6, kind: input, shape index: {}]
  %s7 = inlined_call_operand.hbm [shape: f32[2,1,2,128], index: 7, kind: output, shape index: {}]
  %s8 = sld [smem:[#allocation0]]
  $region81: #{tpu_custom_call.1} parent=0
    _
  %s10 = ssub.s32 1, %s8
  %s11 = scalar_select 0, %s10, %s8
  %12 = sst [smem:[#allocation2]] %s6
  $region1: #{tpu_custom_call.1} parent=0
    #allocation3 [shape = 'u8[1024]{0}', space=smem, size = 0x400, scoped, tag = 'input window, operand 1, single buffered']
    #allocation4 [shape = 's32[2]{0}', space=sflag, size = 0x8, scoped, tag = 'scoped memory for tpu_custom_call.1']
    #allocation5 [shape = 's32[2]{0}', space=sflag, size = 0x8, scoped, tag = 'scoped memory for tpu_custom_call.1']
    #allocation6 [shape = 's32[2]{0}', space=sflag, size = 0x8, scoped, tag = 'scoped memory for tpu_custom_call.1']
    #allocation7 [shape = 'u8[512]{0}', space=smem, size = 0x200, scoped, tag = 'input window, operand 2, single buffered']
    #allocation8 [shape = 'u8[4096]{0}', space=smem, size = 0x1000, scoped, tag = 'input window, operand 3, single buffered']
    #allocation9 [shape = 's32[1]{0}', space=sflag, size = 0x4, scoped, tag = 'scoped memory for tpu_custom_call.1']
    #allocation10 [shape = 'u8[512]{0}', space=smem, size = 0x200, scoped, tag = 'input window, operand 4, single buffered']
    #allocation11 [shape = 'u8[4096]{0}', space=smem, size = 0x1000, scoped, tag = 'input window, operand 5, single buffered']
    #allocation12 [shape = 's32[1]{0}', space=sflag, size = 0x4, scoped, tag = 'scoped memory for tpu_custom_call.1']
    #allocation13 [shape = 'u8[2048]{0}', space=vmem, size = 0x800, scoped, tag = 'output window, operand 0']
    %13 = vsyncpa [#allocation5], 0
    %14 = vsyncpa [#allocation6], 0
    %15 = vsyncpa [#allocation9], 0
    %16 = vsyncpa [#allocation12], 0
    %17 = vsyncpa [#allocation4], 0
    %s18 = scalar_lea.sflag [#allocation4], 1
    %19 = vsyncpa %s18, 0
    loop: start=0, step=1, limit=4
    $region2: #{tpu_custom_call.1} parent=1 // loop_pre_header
      _
    $region3: #{tpu_custom_call.1} parent=1 // loop_header
      %s21 = sphi 0, %s25
      %p22 = scmp.ge.s32.totalorder %s21, 4
      %s28 = sphi 0, %s40
      %s29 = sphi 0, %s36
      %s30 = sphi 0, %s28
      %s31 = sphi 0, %s29
      %s32 = sphi 0, %s30
      %s33 = sphi 0, %s31
      %s45 = sphi 0, %s47
      %s48 = sphi 0, %s45
      %s49 = sphi 0, %s48
      %s65 = sphi 0, %s49
      %s69 = sphi 0, %s69
      %s71 = sphi 0, %s69
      %s72 = sphi 0, %s71
      %s86 = sphi 0, %s72
      %s90 = sphi 0, %s90
      %s92 = sphi 0, %s90
      %s93 = sphi 0, %s92
      %s107 = sphi 0, %s93
      %s111 = sphi 0, %s111
      %s113 = sphi 0, %s111
      %s114 = sphi 0, %s113
      %s128 = sphi 0, %s114
      %s132 = sphi 0, %s132
      %s134 = sphi 0, %s132
      %s135 = sphi 0, %s134
      %s149 = sphi 0, %s135
      %s153 = sphi 0, %s153
      %s155 = sphi 0, %s153
      %s156 = sphi 0, %s155
      %s170 = sphi 0, %s156
      %s174 = sphi 0, %s174
      %s176 = sphi 0, %s174
      %s177 = sphi 0, %s176
      %s191 = sphi 0, %s177
      %s199 = sphi 0, %s201
      %s202 = sphi 0, %s199
      %s203 = sphi 0, %s202
      %s219 = sphi 0, %s203
    $region4: #{tpu_custom_call.1} parent=1 // loop_header_branch
      %24 = sbr.rel (%p22) target = $region8
    $region5: #{tpu_custom_call.1} parent=1 // loop_body
      %s26 = ssub.s32 %s21, 1
      %s27 = ssub.s32 %s21, 2
      %s34 = sadd.s32 1, %s29
      %p35 = scmp.ge.s32.totalorder %s34, 1
      %s36 = scalar_select %p35, 0, %s34
      %s37 = sadd.s32 1, %s28
      %s38 = scalar_select %p35, %s37, %s28
      %p39 = scmp.ge.s32.totalorder %s38, 2
      %s40 = scalar_select %p39, 0, %s38
      %s41 = ssub.s32 %s28, %s40
      %s42 = ssub.s32 %s29, %s36
      %s43 = sor.u32 %s41, %s42
      %p44 = scmp.eq.s32.totalorder %s43, 0
      %s46 = sadd.s32 %s45, 1
      %s47 = scalar_select %p44, %s45, %s46
      %p50 = pneg %p44
      %p51 = scmp.eq.s32.totalorder %s21, 1
      %p52 = por %p50, %p51
      %p53 = scmp.ne.s32.totalorder %s45, %s48
      %p54 = scmp.eq.s32.totalorder %s21, 0
      %p55 = por %p53, %p54
      %p56 = scmp.ne.s32.totalorder %s45, %s48
      %p57 = scmp.eq.s32.totalorder %s26, 1
      %p58 = por %p56, %p57
      %p59 = scmp.ne.s32.totalorder %s48, %s49
      %p60 = scmp.eq.s32.totalorder %s26, 0
      %p61 = por %p59, %p60
      %p62 = scmp.ne.s32.totalorder %s48, %s49
      %p63 = scmp.eq.s32.totalorder %s27, 1
      %p64 = por %p62, %p63
      %p66 = scmp.ne.s32.totalorder %s49, %s65
      %p67 = scmp.eq.s32.totalorder %s27, 0
      %p68 = por %p66, %p67
      %s70 = sadd.s32 %s69, 1
      %p73 = scmp.eq.s32.totalorder %s21, 1
      %p74 = scmp.ne.s32.totalorder %s69, %s71
      %p75 = scmp.eq.s32.totalorder %s21, 0
      %p76 = por %p74, %p75
      %p77 = scmp.ne.s32.totalorder %s69, %s71
      %p78 = scmp.eq.s32.totalorder %s26, 1
      %p79 = por %p77, %p78
      %p80 = scmp.ne.s32.totalorder %s71, %s72
      %p81 = scmp.eq.s32.totalorder %s26, 0
      %p82 = por %p80, %p81
      %p83 = scmp.ne.s32.totalorder %s71, %s72
      %p84 = scmp.eq.s32.totalorder %s27, 1
      %p85 = por %p83, %p84
      %p87 = scmp.ne.s32.totalorder %s72, %s86
      %p88 = scmp.eq.s32.totalorder %s27, 0
      %p89 = por %p87, %p88
      %s91 = sadd.s32 %s90, 1
      %p94 = scmp.eq.s32.totalorder %s21, 1
      %p95 = scmp.ne.s32.totalorder %s90, %s92
      %p96 = scmp.eq.s32.totalorder %s21, 0
      %p97 = por %p95, %p96
      %p98 = scmp.ne.s32.totalorder %s90, %s92
      %p99 = scmp.eq.s32.totalorder %s26, 1
      %p100 = por %p98, %p99
      %p101 = scmp.ne.s32.totalorder %s92, %s93
      %p102 = scmp.eq.s32.totalorder %s26, 0
      %p103 = por %p101, %p102
      %p104 = scmp.ne.s32.totalorder %s92, %s93
      %p105 = scmp.eq.s32.totalorder %s27, 1
      %p106 = por %p104, %p105
      %p108 = scmp.ne.s32.totalorder %s93, %s107
      %p109 = scmp.eq.s32.totalorder %s27, 0
      %p110 = por %p108, %p109
      %s112 = sadd.s32 %s111, 1
      %p115 = scmp.eq.s32.totalorder %s21, 1
      %p116 = scmp.ne.s32.totalorder %s111, %s113
      %p117 = scmp.eq.s32.totalorder %s21, 0
      %p118 = por %p116, %p117
      %p119 = scmp.ne.s32.totalorder %s111, %s113
      %p120 = scmp.eq.s32.totalorder %s26, 1
      %p121 = por %p119, %p120
      %p122 = scmp.ne.s32.totalorder %s113, %s114
      %p123 = scmp.eq.s32.totalorder %s26, 0
      %p124 = por %p122, %p123
      %p125 = scmp.ne.s32.totalorder %s113, %s114
      %p126 = scmp.eq.s32.totalorder %s27, 1
      %p127 = por %p125, %p126
      %p129 = scmp.ne.s32.totalorder %s114, %s128
      %p130 = scmp.eq.s32.totalorder %s27, 0
      %p131 = por %p129, %p130
      %s133 = sadd.s32 %s132, 1
      %p136 = scmp.eq.s32.totalorder %s21, 1
      %p137 = scmp.ne.s32.totalorder %s132, %s134
      %p138 = scmp.eq.s32.totalorder %s21, 0
      %p139 = por %p137, %p138
      %p140 = scmp.ne.s32.totalorder %s132, %s134
      %p141 = scmp.eq.s32.totalorder %s26, 1
      %p142 = por %p140, %p141
      %p143 = scmp.ne.s32.totalorder %s134, %s135
      %p144 = scmp.eq.s32.totalorder %s26, 0
      %p145 = por %p143, %p144
      %p146 = scmp.ne.s32.totalorder %s134, %s135
      %p147 = scmp.eq.s32.totalorder %s27, 1
      %p148 = por %p146, %p147
      %p150 = scmp.ne.s32.totalorder %s135, %s149
      %p151 = scmp.eq.s32.totalorder %s27, 0
      %p152 = por %p150, %p151
      %s154 = sadd.s32 %s153, 1
      %p157 = scmp.eq.s32.totalorder %s21, 1
      %p158 = scmp.ne.s32.totalorder %s153, %s155
      %p159 = scmp.eq.s32.totalorder %s21, 0
      %p160 = por %p158, %p159
      %p161 = scmp.ne.s32.totalorder %s153, %s155
      %p162 = scmp.eq.s32.totalorder %s26, 1
      %p163 = por %p161, %p162
      %p164 = scmp.ne.s32.totalorder %s155, %s156
      %p165 = scmp.eq.s32.totalorder %s26, 0
      %p166 = por %p164, %p165
      %p167 = scmp.ne.s32.totalorder %s155, %s156
      %p168 = scmp.eq.s32.totalorder %s27, 1
      %p169 = por %p167, %p168
      %p171 = scmp.ne.s32.totalorder %s156, %s170
      %p172 = scmp.eq.s32.totalorder %s27, 0
      %p173 = por %p171, %p172
      %s175 = sadd.s32 %s174, 1
      %p178 = scmp.eq.s32.totalorder %s21, 1
      %p179 = scmp.ne.s32.totalorder %s174, %s176
      %p180 = scmp.eq.s32.totalorder %s21, 0
      %p181 = por %p179, %p180
      %p182 = scmp.ne.s32.totalorder %s174, %s176
      %p183 = scmp.eq.s32.totalorder %s26, 1
      %p184 = por %p182, %p183
      %p185 = scmp.ne.s32.totalorder %s176, %s177
      %p186 = scmp.eq.s32.totalorder %s26, 0
      %p187 = por %p185, %p186
      %p188 = scmp.ne.s32.totalorder %s176, %s177
      %p189 = scmp.eq.s32.totalorder %s27, 1
      %p190 = por %p188, %p189
      %p192 = scmp.ne.s32.totalorder %s177, %s191
      %p193 = scmp.eq.s32.totalorder %s27, 0
      %p194 = por %p192, %p193
      %s195 = ssub.s32 %s28, %s40
      %s196 = ssub.s32 %s29, %s36
      %s197 = sor.u32 %s195, %s196
      %p198 = scmp.eq.s32.totalorder %s197, 0
      %s200 = sadd.s32 %s199, 1
      %s201 = scalar_select %p198, %s199, %s200
      %p204 = pneg %p198
      %p205 = scmp.eq.s32.totalorder %s21, 1
      %p206 = por %p204, %p205
      %p207 = scmp.ne.s32.totalorder %s199, %s202
      %p208 = scmp.eq.s32.totalorder %s21, 0
      %p209 = por %p207, %p208
      %p210 = scmp.ne.s32.totalorder %s199, %s202
      %p211 = scmp.eq.s32.totalorder %s26, 1
      %p212 = por %p210, %p211
      %p213 = scmp.ne.s32.totalorder %s202, %s203
      %p214 = scmp.eq.s32.totalorder %s26, 0
      %p215 = por %p213, %p214
      %p216 = scmp.ne.s32.totalorder %s202, %s203
      %p217 = scmp.eq.s32.totalorder %s27, 1
      %p218 = por %p216, %p217
      %p220 = scmp.ne.s32.totalorder %s203, %s219
      %p221 = scmp.eq.s32.totalorder %s27, 0
      %p222 = por %p220, %p221
      %p223 = scmp.le.s32.totalorder 1, %s21
      %p224 = scmp.lt.s32.totalorder %s21, 3
      %p225 = pnand %p223, %p224
      %p226 = pneg %p225
      // Predicated region
      $region9: #{tpu_custom_call.1} parent=5 // pred_check
        _
      $region10: #{tpu_custom_call.1} parent=5 // pred_check_branch
        %228 = sbr.rel (%p225) target = $region12
      $region11: #{tpu_custom_call.1} parent=5 // pred_region
        %s229 = ssub.s32 %s21, 1
        // Predicated region
        $region13: #{tpu_custom_call.1} parent=11 // pred_check
          %p230 = pneg %p82
        $region14: #{tpu_custom_call.1} parent=11 // pred_check_branch
          %232 = sbr.rel (%p230) target = $region16
        $region15: #{tpu_custom_call.1} parent=11 // pred_region
          %s234 = ssub.s32 32, 32
          %235 = vsyncadd [#allocation5], %s234
          %238 = dma.hbm_to_smem %s1, 32, [#allocation3], [#allocation5]
        $region16: #{tpu_custom_call.1} parent=11 // pred_fallthru
          _
        // Predicated region
        $region17: #{tpu_custom_call.1} parent=11 // pred_check
          %p239 = pneg %p103
        $region18: #{tpu_custom_call.1} parent=11 // pred_check_branch
          %241 = sbr.rel (%p239) target = $region20
        $region19: #{tpu_custom_call.1} parent=11 // pred_region
          %s243 = ssub.s32 16, 16
          %244 = vsyncadd [#allocation6], %s243
          %s246 = sshll.u32 %s2, 4
          %s247 = int_to_ptr.vmem [resolvable:$true] %s246
          %249 = dma.vmem_to_smem %s247, 16, [#allocation7], [#allocation6]
        $region20: #{tpu_custom_call.1} parent=11 // pred_fallthru
          _
        // Predicated region
        $region21: #{tpu_custom_call.1} parent=11 // pred_check
          %p250 = pneg %p124
        $region22: #{tpu_custom_call.1} parent=11 // pred_check_branch
          %252 = sbr.rel (%p250) target = $region24
        $region23: #{tpu_custom_call.1} parent=11 // pred_region
          %s254 = ssub.s32 128, 128
          %255 = vsyncadd [#allocation9], %s254
          %s257 = sshll.u32 %s3, 4
          %s258 = int_to_ptr.vmem [resolvable:$true] %s257
          %260 = dma.vmem_to_smem %s258, 128, [#allocation8], [#allocation9]
        $region24: #{tpu_custom_call.1} parent=11 // pred_fallthru
          _
        // Predicated region
        $region25: #{tpu_custom_call.1} parent=11 // pred_check
          %p261 = pneg %p145
        $region26: #{tpu_custom_call.1} parent=11 // pred_check_branch
          %263 = sbr.rel (%p261) target = $region28
        $region27: #{tpu_custom_call.1} parent=11 // pred_region
          %s265 = ssub.s32 16, 16
          %266 = vsyncadd [#allocation9], %s265
          %s268 = sshll.u32 %s4, 4
          %s269 = int_to_ptr.vmem [resolvable:$true] %s268
          %271 = dma.vmem_to_smem %s269, 16, [#allocation10], [#allocation9]
        $region28: #{tpu_custom_call.1} parent=11 // pred_fallthru
          _
        // Predicated region
        $region29: #{tpu_custom_call.1} parent=11 // pred_check
          %p272 = pneg %p166
        $region30: #{tpu_custom_call.1} parent=11 // pred_check_branch
          %274 = sbr.rel (%p272) target = $region32
        $region31: #{tpu_custom_call.1} parent=11 // pred_region
          %s276 = ssub.s32 128, 128
          %277 = vsyncadd [#allocation12], %s276
          %s279 = sshll.u32 %s5, 4
          %s280 = int_to_ptr.vmem [resolvable:$true] %s279
          %282 = dma.vmem_to_smem %s280, 128, [#allocation11], [#allocation12]
        $region32: #{tpu_custom_call.1} parent=11 // pred_fallthru
          _
        // Predicated region
        $region33: #{tpu_custom_call.1} parent=11 // pred_check
          %p283 = pneg %p187
        $region34: #{tpu_custom_call.1} parent=11 // pred_check_branch
          %285 = sbr.rel (%p283) target = $region36
        $region35: #{tpu_custom_call.1} parent=11 // pred_region
          _
        $region36: #{tpu_custom_call.1} parent=11 // pred_fallthru
          _
      $region12: #{tpu_custom_call.1} parent=5 // pred_fallthru
        _
      %p286 = scmp.lt.s32.totalorder %s21, 2
      // Predicated region
      $region37: #{tpu_custom_call.1} parent=5 // pred_check
        %p287 = pneg %p286
      $region38: #{tpu_custom_call.1} parent=5 // pred_check_branch
        %289 = sbr.rel (%p287) target = $region40
      $region39: #{tpu_custom_call.1} parent=5 // pred_region
        // Predicated region
        $region41: #{tpu_custom_call.1} parent=39 // pred_check
          %p290 = pneg %p55
        $region42: #{tpu_custom_call.1} parent=39 // pred_check_branch
          %292 = sbr.rel (%p290) target = $region44
        $region43: #{tpu_custom_call.1} parent=39 // pred_region
          %p293 = scmp.lt.s32.totalorder %s28, 1
          %s294 = scalar_select %p293, %s28, 1
          %p295 = scmp.lt.s32.totalorder %s29, 0
          %s296 = scalar_select %p295, %s29, 0
          %s297 = smul.addr %s294, 2
          %s298 = sadd.s32 %s296, %s297
          %s299 = smul.addr %s298, 2
          %s300 = scalar_lea.vmem %s0, %s299
        $region44: #{tpu_custom_call.1} parent=39 // pred_fallthru
          _
      $region40: #{tpu_custom_call.1} parent=5 // pred_fallthru
        _
      %p301 = scmp.le.s32.totalorder 1, %s21
      %p302 = scmp.lt.s32.totalorder %s21, 3
      %p303 = pnand %p301, %p302
      %p304 = pneg %p303
      // Predicated region
      $region45: #{tpu_custom_call.1} parent=5 // pred_check
        _
      $region46: #{tpu_custom_call.1} parent=5 // pred_check_branch
        %306 = sbr.rel (%p303) target = $region48
      $region47: #{tpu_custom_call.1} parent=5 // pred_region
        %s307 = ssub.s32 %s21, 1
        // Predicated region
        $region49: #{tpu_custom_call.1} parent=47 // pred_check
          %p308 = pneg %p82
        $region50: #{tpu_custom_call.1} parent=47 // pred_check_branch
          %310 = sbr.rel (%p308) target = $region52
        $region51: #{tpu_custom_call.1} parent=47 // pred_region
          %311 = dma.done [#allocation5], 32
        $region52: #{tpu_custom_call.1} parent=47 // pred_fallthru
          _
        // Predicated region
        $region53: #{tpu_custom_call.1} parent=47 // pred_check
          %p312 = pneg %p103
        $region54: #{tpu_custom_call.1} parent=47 // pred_check_branch
          %314 = sbr.rel (%p312) target = $region56
        $region55: #{tpu_custom_call.1} parent=47 // pred_region
          %315 = dma.done [#allocation6], 16
        $region56: #{tpu_custom_call.1} parent=47 // pred_fallthru
          _
        // Predicated region
        $region57: #{tpu_custom_call.1} parent=47 // pred_check
          %p316 = pneg %p124
        $region58: #{tpu_custom_call.1} parent=47 // pred_check_branch
          %318 = sbr.rel (%p316) target = $region60
        $region59: #{tpu_custom_call.1} parent=47 // pred_region
          %319 = dma.done [#allocation9], 128
        $region60: #{tpu_custom_call.1} parent=47 // pred_fallthru
          _
        // Predicated region
        $region61: #{tpu_custom_call.1} parent=47 // pred_check
          %p320 = pneg %p145
        $region62: #{tpu_custom_call.1} parent=47 // pred_check_branch
          %322 = sbr.rel (%p320) target = $region64
        $region63: #{tpu_custom_call.1} parent=47 // pred_region
          %323 = dma.done [#allocation9], 16
        $region64: #{tpu_custom_call.1} parent=47 // pred_fallthru
          _
        // Predicated region
        $region65: #{tpu_custom_call.1} parent=47 // pred_check
          %p324 = pneg %p166
        $region66: #{tpu_custom_call.1} parent=47 // pred_check_branch
          %326 = sbr.rel (%p324) target = $region68
        $region67: #{tpu_custom_call.1} parent=47 // pred_region
          %327 = dma.done [#allocation12], 128
        $region68: #{tpu_custom_call.1} parent=47 // pred_fallthru
          _
        %328 = sfence
        %p329 = scmp.lt.s32.totalorder %s30, 1
        %s330 = scalar_select %p329, %s30, 1
        %p331 = scmp.lt.s32.totalorder %s31, 0
        %s332 = scalar_select %p331, %s31, 0
        %s333 = smul.addr %s330, 2
        %s334 = sadd.s32 %s332, %s333
        %s335 = smul.addr %s334, 2
        %s336 = scalar_lea.vmem %s0, %s335
        %p337 = pneg %p61
        %p338 = pneg %p58
        %p339 = pneg %p82
        %p340 = pneg %p79
        %p341 = pneg %p103
        %p342 = pneg %p100
        %p343 = pneg %p124
        %p344 = pneg %p121
        %p345 = pneg %p145
        %p346 = pneg %p142
        %p347 = pneg %p166
        %p348 = pneg %p163
        %p349 = pneg %p187
        %p350 = pneg %p184
        %p351 = pneg %p215
        %p352 = pneg %p212
        %s353 = sand.u32 %s202, 1
        %s354 = scalar_lea.sflag [#allocation4], %s353
        %s355 = sand.u32 %s202, 1
        %s356 = smul.addr %s355, 2
        %s357 = scalar_lea.vmem [#allocation13], %s356
        %p358 = scmp.lt.s32.totalorder %s30, 1
        %s359 = scalar_select %p358, %s30, 1
        %p360 = scmp.lt.s32.totalorder %s31, 0
        %s361 = scalar_select %p360, %s31, 0
        %s362 = smul.addr %s359, 2
        %s363 = sadd.s32 %s361, %s362
        %s364 = smul.addr %s363, 2
        %s365 = scalar_lea.vmem %s0, %s364
        %s366 = sld [smem:[#allocation3]]
        %s367 = sld [smem:[#allocation3 + $0x1]]
        %s368 = sld [smem:[#allocation3 + $0x2]]
        %s369 = sld [smem:[#allocation3 + $0x3]]
        %s370 = sld [smem:[#allocation3 + $0x4]]
        %s371 = sld [smem:[#allocation3 + $0x5]]
        %s372 = sld [smem:[#allocation3 + $0x6]]
        %s373 = sld [smem:[#allocation3 + $0x7]]
        %s374 = sld [smem:[#allocation3 + $0x80]]
        %s375 = sld [smem:[#allocation3 + $0x81]]
        %s376 = sld [smem:[#allocation3 + $0x82]]
        %s377 = sld [smem:[#allocation3 + $0x83]]
        %s378 = sld [smem:[#allocation3 + $0x84]]
        %s379 = sld [smem:[#allocation3 + $0x85]]
        %s380 = sld [smem:[#allocation3 + $0x86]]
        %s381 = sld [smem:[#allocation3 + $0x87]]
        %s382 = sld [smem:[#allocation7]]
        %s383 = sld [smem:[#allocation7 + $0x1]]
        %s384 = sld [smem:[#allocation7 + $0x2]]
        %s385 = sld [smem:[#allocation7 + $0x3]]
        %s386 = sld [smem:[#allocation7 + $0x4]]
        %s387 = sld [smem:[#allocation7 + $0x5]]
        %s388 = sld [smem:[#allocation7 + $0x6]]
        %s389 = sld [smem:[#allocation7 + $0x7]]
        %s390 = sld [smem:[#allocation8]]
        %s391 = sld [smem:[#allocation8 + $0x1]]
        %s392 = sld [smem:[#allocation8 + $0x2]]
        %s393 = sld [smem:[#allocation8 + $0x3]]
        %s394 = sld [smem:[#allocation8 + $0x4]]
        %s395 = sld [smem:[#allocation8 + $0x5]]
        %s396 = sld [smem:[#allocation8 + $0x6]]
        %s397 = sld [smem:[#allocation8 + $0x7]]
        %s398 = sld [smem:[#allocation8 + $0x80]]
        %s399 = sld [smem:[#allocation8 + $0x81]]
        %s400 = sld [smem:[#allocation8 + $0x82]]
        %s401 = sld [smem:[#allocation8 + $0x83]]
        %s402 = sld [smem:[#allocation8 + $0x84]]
        %s403 = sld [smem:[#allocation8 + $0x85]]
        %s404 = sld [smem:[#allocation8 + $0x86]]
        %s405 = sld [smem:[#allocation8 + $0x87]]
        %s406 = sld [smem:[#allocation8 + $0x100]]
        %s407 = sld [smem:[#allocation8 + $0x101]]
        %s408 = sld [smem:[#allocation8 + $0x102]]
        %s409 = sld [smem:[#allocation8 + $0x103]]
        %s410 = sld [smem:[#allocation8 + $0x104]]
        %s411 = sld [smem:[#allocation8 + $0x105]]
        %s412 = sld [smem:[#allocation8 + $0x106]]
        %s413 = sld [smem:[#allocation8 + $0x107]]
        %s414 = sld [smem:[#allocation8 + $0x180]]
        %s415 = sld [smem:[#allocation8 + $0x181]]
        %s416 = sld [smem:[#allocation8 + $0x182]]
        %s417 = sld [smem:[#allocation8 + $0x183]]
        %s418 = sld [smem:[#allocation8 + $0x184]]
        %s419 = sld [smem:[#allocation8 + $0x185]]
        %s420 = sld [smem:[#allocation8 + $0x186]]
        %s421 = sld [smem:[#allocation8 + $0x187]]
        %s422 = sld [smem:[#allocation8 + $0x200]]
        %s423 = sld [smem:[#allocation8 + $0x201]]
        %s424 = sld [smem:[#allocation8 + $0x202]]
        %s425 = sld [smem:[#allocation8 + $0x203]]
        %s426 = sld [smem:[#allocation8 + $0x204]]
        %s427 = sld [smem:[#allocation8 + $0x205]]
        %s428 = sld [smem:[#allocation8 + $0x206]]
        %s429 = sld [smem:[#allocation8 + $0x207]]
        %s430 = sld [smem:[#allocation8 + $0x280]]
        %s431 = sld [smem:[#allocation8 + $0x281]]
        %s432 = sld [smem:[#allocation8 + $0x282]]
        %s433 = sld [smem:[#allocation8 + $0x283]]
        %s434 = sld [smem:[#allocation8 + $0x284]]
        %s435 = sld [smem:[#allocation8 + $0x285]]
        %s436 = sld [smem:[#allocation8 + $0x286]]
        %s437 = sld [smem:[#allocation8 + $0x287]]
        %s438 = sld [smem:[#allocation8 + $0x300]]
        %s439 = sld [smem:[#allocation8 + $0x301]]
        %s440 = sld [smem:[#allocation8 + $0x302]]
        %s441 = sld [smem:[#allocation8 + $0x303]]
        %s442 = sld [smem:[#allocation8 + $0x304]]
        %s443 = sld [smem:[#allocation8 + $0x305]]
        %s444 = sld [smem:[#allocation8 + $0x306]]
        %s445 = sld [smem:[#allocation8 + $0x307]]
        %s446 = sld [smem:[#allocation8 + $0x380]]
        %s447 = sld [smem:[#allocation8 + $0x381]]
        %s448 = sld [smem:[#allocation8 + $0x382]]
        %s449 = sld [smem:[#allocation8 + $0x383]]
        %s450 = sld [smem:[#allocation8 + $0x384]]
        %s451 = sld [smem:[#allocation8 + $0x385]]
        %s452 = sld [smem:[#allocation8 + $0x386]]
        %s453 = sld [smem:[#allocation8 + $0x387]]
        %s454 = sld [smem:[#allocation10]]
        %s455 = sld [smem:[#allocation10 + $0x1]]
        %s456 = sld [smem:[#allocation10 + $0x2]]
        %s457 = sld [smem:[#allocation10 + $0x3]]
        %s458 = sld [smem:[#allocation10 + $0x4]]
        %s459 = sld [smem:[#allocation10 + $0x5]]
        %s460 = sld [smem:[#allocation10 + $0x6]]
        %s461 = sld [smem:[#allocation10 + $0x7]]
        %s462 = sld [smem:[#allocation11]]
        %s463 = sld [smem:[#allocation11 + $0x80]]
        %s464 = sld [smem:[#allocation11 + $0x100]]
        %s465 = sld [smem:[#allocation11 + $0x180]]
        %s466 = sld [smem:[#allocation11 + $0x200]]
        %s467 = sld [smem:[#allocation11 + $0x280]]
        %s468 = sld [smem:[#allocation11 + $0x300]]
        %s469 = sld [smem:[#allocation11 + $0x380]]
        %s470 = sld [smem:[#allocation2]]
        %v471 = vld [vmem:[%s365] sm:$0x3]
        %s472 = scalar_lea.vmem %s365, 2
        %v473 = vld [vmem:[%s472] sm:$0x3]
        %v474 = vstv %s366
        %v475 = vmul.f32 %v474, %v471
        %v476 = vstv %s374
        %v477 = vmul.f32 %v476, %v473
        %v478 = vadd.f32 %v475, %v477
        %v479 = vstv %s382
        %v480 = vadd.f32 %v478, %v479
        %v481 = vmax.f32 %v480, 0.0
        %v482 = vstv %s367
        %v483 = vmul.f32 %v482, %v471
        %v484 = vstv %s375
        %v485 = vmul.f32 %v484, %v473
        %v486 = vadd.f32 %v483, %v485
        %v487 = vstv %s383
        %v488 = vadd.f32 %v486, %v487
        %v489 = vmax.f32 %v488, 0.0
        %v490 = vstv %s368
        %v491 = vmul.f32 %v490, %v471
        %v492 = vstv %s376
        %v493 = vmul.f32 %v492, %v473
        %v494 = vadd.f32 %v491, %v493
        %v495 = vstv %s384
        %v496 = vadd.f32 %v494, %v495
        %v497 = vmax.f32 %v496, 0.0
        %v498 = vstv %s369
        %v499 = vmul.f32 %v498, %v471
        %v500 = vstv %s377
        %v501 = vmul.f32 %v500, %v473
        %v502 = vadd.f32 %v499, %v501
        %v503 = vstv %s385
        %v504 = vadd.f32 %v502, %v503
        %v505 = vmax.f32 %v504, 0.0
        %v506 = vstv %s370
        %v507 = vmul.f32 %v506, %v471
        %v508 = vstv %s378
        %v509 = vmul.f32 %v508, %v473
        %v510 = vadd.f32 %v507, %v509
        %v511 = vstv %s386
        %v512 = vadd.f32 %v510, %v511
        %v513 = vmax.f32 %v512, 0.0
        %v514 = vstv %s371
        %v515 = vmul.f32 %v514, %v471
        %v516 = vstv %s379
        %v517 = vmul.f32 %v516, %v473
        %v518 = vadd.f32 %v515, %v517
        %v519 = vstv %s387
        %v520 = vadd.f32 %v518, %v519
        %v521 = vmax.f32 %v520, 0.0
        %v522 = vstv %s372
        %v523 = vmul.f32 %v522, %v471
        %v524 = vstv %s380
        %v525 = vmul.f32 %v524, %v473
        %v526 = vadd.f32 %v523, %v525
        %v527 = vstv %s388
        %v528 = vadd.f32 %v526, %v527
        %v529 = vmax.f32 %v528, 0.0
        %v530 = vstv %s373
        %v531 = vmul.f32 %v530, %v471
        %v532 = vstv %s381
        %v533 = vmul.f32 %v532, %v473
        %v534 = vadd.f32 %v531, %v533
        %v535 = vstv %s389
        %v536 = vadd.f32 %v534, %v535
        %v537 = vmax.f32 %v536, 0.0
        %v538 = vstv %s390
        %v539 = vmul.f32 %v481, %v538
        %v540 = vstv %s398
        %v541 = vmul.f32 %v489, %v540
        %v542 = vadd.f32 %v539, %v541
        %v543 = vstv %s406
        %v544 = vmul.f32 %v497, %v543
        %v545 = vadd.f32 %v542, %v544
        %v546 = vstv %s414
        %v547 = vmul.f32 %v505, %v546
        %v548 = vadd.f32 %v545, %v547
        %v549 = vstv %s422
        %v550 = vmul.f32 %v513, %v549
        %v551 = vadd.f32 %v548, %v550
        %v552 = vstv %s430
        %v553 = vmul.f32 %v521, %v552
        %v554 = vadd.f32 %v551, %v553
        %v555 = vstv %s438
        %v556 = vmul.f32 %v529, %v555
        %v557 = vadd.f32 %v554, %v556
        %v558 = vstv %s446
        %v559 = vmul.f32 %v537, %v558
        %v560 = vadd.f32 %v557, %v559
        %v561 = vstv %s454
        %v562 = vadd.f32 %v560, %v561
        %v563 = vmax.f32 %v562, 0.0
        %v564 = vstv %s391
        %v565 = vmul.f32 %v481, %v564
        %v566 = vstv %s399
        %v567 = vmul.f32 %v489, %v566
        %v568 = vadd.f32 %v565, %v567
        %v569 = vstv %s407
        %v570 = vmul.f32 %v497, %v569
        %v571 = vadd.f32 %v568, %v570
        %v572 = vstv %s415
        %v573 = vmul.f32 %v505, %v572
        %v574 = vadd.f32 %v571, %v573
        %v575 = vstv %s423
        %v576 = vmul.f32 %v513, %v575
        %v577 = vadd.f32 %v574, %v576
        %v578 = vstv %s431
        %v579 = vmul.f32 %v521, %v578
        %v580 = vadd.f32 %v577, %v579
        %v581 = vstv %s439
        %v582 = vmul.f32 %v529, %v581
        %v583 = vadd.f32 %v580, %v582
        %v584 = vstv %s447
        %v585 = vmul.f32 %v537, %v584
        %v586 = vadd.f32 %v583, %v585
        %v587 = vstv %s455
        %v588 = vadd.f32 %v586, %v587
        %v589 = vmax.f32 %v588, 0.0
        %v590 = vstv %s392
        %v591 = vmul.f32 %v481, %v590
        %v592 = vstv %s400
        %v593 = vmul.f32 %v489, %v592
        %v594 = vadd.f32 %v591, %v593
        %v595 = vstv %s408
        %v596 = vmul.f32 %v497, %v595
        %v597 = vadd.f32 %v594, %v596
        %v598 = vstv %s416
        %v599 = vmul.f32 %v505, %v598
        %v600 = vadd.f32 %v597, %v599
        %v601 = vstv %s424
        %v602 = vmul.f32 %v513, %v601
        %v603 = vadd.f32 %v600, %v602
        %v604 = vstv %s432
        %v605 = vmul.f32 %v521, %v604
        %v606 = vadd.f32 %v603, %v605
        %v607 = vstv %s440
        %v608 = vmul.f32 %v529, %v607
        %v609 = vadd.f32 %v606, %v608
        %v610 = vstv %s448
        %v611 = vmul.f32 %v537, %v610
        %v612 = vadd.f32 %v609, %v611
        %v613 = vstv %s456
        %v614 = vadd.f32 %v612, %v613
        %v615 = vmax.f32 %v614, 0.0
        %v616 = vstv %s393
        %v617 = vmul.f32 %v481, %v616
        %v618 = vstv %s401
        %v619 = vmul.f32 %v489, %v618
        %v620 = vadd.f32 %v617, %v619
        %v621 = vstv %s409
        %v622 = vmul.f32 %v497, %v621
        %v623 = vadd.f32 %v620, %v622
        %v624 = vstv %s417
        %v625 = vmul.f32 %v505, %v624
        %v626 = vadd.f32 %v623, %v625
        %v627 = vstv %s425
        %v628 = vmul.f32 %v513, %v627
        %v629 = vadd.f32 %v626, %v628
        %v630 = vstv %s433
        %v631 = vmul.f32 %v521, %v630
        %v632 = vadd.f32 %v629, %v631
        %v633 = vstv %s441
        %v634 = vmul.f32 %v529, %v633
        %v635 = vadd.f32 %v632, %v634
        %v636 = vstv %s449
        %v637 = vmul.f32 %v537, %v636
        %v638 = vadd.f32 %v635, %v637
        %v639 = vstv %s457
        %v640 = vadd.f32 %v638, %v639
        %v641 = vmax.f32 %v640, 0.0
        %v642 = vstv %s394
        %v643 = vmul.f32 %v481, %v642
        %v644 = vstv %s402
        %v645 = vmul.f32 %v489, %v644
        %v646 = vadd.f32 %v643, %v645
        %v647 = vstv %s410
        %v648 = vmul.f32 %v497, %v647
        %v649 = vadd.f32 %v646, %v648
        %v650 = vstv %s418
        %v651 = vmul.f32 %v505, %v650
        %v652 = vadd.f32 %v649, %v651
        %v653 = vstv %s426
        %v654 = vmul.f32 %v513, %v653
        %v655 = vadd.f32 %v652, %v654
        %v656 = vstv %s434
        %v657 = vmul.f32 %v521, %v656
        %v658 = vadd.f32 %v655, %v657
        %v659 = vstv %s442
        %v660 = vmul.f32 %v529, %v659
        %v661 = vadd.f32 %v658, %v660
        %v662 = vstv %s450
        %v663 = vmul.f32 %v537, %v662
        %v664 = vadd.f32 %v661, %v663
        %v665 = vstv %s458
        %v666 = vadd.f32 %v664, %v665
        %v667 = vmax.f32 %v666, 0.0
        %v668 = vstv %s395
        %v669 = vmul.f32 %v481, %v668
        %v670 = vstv %s403
        %v671 = vmul.f32 %v489, %v670
        %v672 = vadd.f32 %v669, %v671
        %v673 = vstv %s411
        %v674 = vmul.f32 %v497, %v673
        %v675 = vadd.f32 %v672, %v674
        %v676 = vstv %s419
        %v677 = vmul.f32 %v505, %v676
        %v678 = vadd.f32 %v675, %v677
        %v679 = vstv %s427
        %v680 = vmul.f32 %v513, %v679
        %v681 = vadd.f32 %v678, %v680
        %v682 = vstv %s435
        %v683 = vmul.f32 %v521, %v682
        %v684 = vadd.f32 %v681, %v683
        %v685 = vstv %s443
        %v686 = vmul.f32 %v529, %v685
        %v687 = vadd.f32 %v684, %v686
        %v688 = vstv %s451
        %v689 = vmul.f32 %v537, %v688
        %v690 = vadd.f32 %v687, %v689
        %v691 = vstv %s459
        %v692 = vadd.f32 %v690, %v691
        %v693 = vmax.f32 %v692, 0.0
        %v694 = vstv %s396
        %v695 = vmul.f32 %v481, %v694
        %v696 = vstv %s404
        %v697 = vmul.f32 %v489, %v696
        %v698 = vadd.f32 %v695, %v697
        %v699 = vstv %s412
        %v700 = vmul.f32 %v497, %v699
        %v701 = vadd.f32 %v698, %v700
        %v702 = vstv %s420
        %v703 = vmul.f32 %v505, %v702
        %v704 = vadd.f32 %v701, %v703
        %v705 = vstv %s428
        %v706 = vmul.f32 %v513, %v705
        %v707 = vadd.f32 %v704, %v706
        %v708 = vstv %s436
        %v709 = vmul.f32 %v521, %v708
        %v710 = vadd.f32 %v707, %v709
        %v711 = vstv %s444
        %v712 = vmul.f32 %v529, %v711
        %v713 = vadd.f32 %v710, %v712
        %v714 = vstv %s452
        %v715 = vmul.f32 %v537, %v714
        %v716 = vadd.f32 %v713, %v715
        %v717 = vstv %s460
        %v718 = vadd.f32 %v716, %v717
        %v719 = vmax.f32 %v718, 0.0
        %v720 = vstv %s397
        %v721 = vmul.f32 %v481, %v720
        %v722 = vstv %s405
        %v723 = vmul.f32 %v489, %v722
        %v724 = vadd.f32 %v721, %v723
        %v725 = vstv %s413
        %v726 = vmul.f32 %v497, %v725
        %v727 = vadd.f32 %v724, %v726
        %v728 = vstv %s421
        %v729 = vmul.f32 %v505, %v728
        %v730 = vadd.f32 %v727, %v729
        %v731 = vstv %s429
        %v732 = vmul.f32 %v513, %v731
        %v733 = vadd.f32 %v730, %v732
        %v734 = vstv %s437
        %v735 = vmul.f32 %v521, %v734
        %v736 = vadd.f32 %v733, %v735
        %v737 = vstv %s445
        %v738 = vmul.f32 %v529, %v737
        %v739 = vadd.f32 %v736, %v738
        %v740 = vstv %s453
        %v741 = vmul.f32 %v537, %v740
        %v742 = vadd.f32 %v739, %v741
        %v743 = vstv %s461
        %v744 = vadd.f32 %v742, %v743
        %v745 = vmax.f32 %v744, 0.0
        %v746 = vstv %s462
        %v747 = vmul.f32 %v563, %v746
        %v748 = vstv %s463
        %v749 = vmul.f32 %v589, %v748
        %v750 = vadd.f32 %v747, %v749
        %v751 = vstv %s464
        %v752 = vmul.f32 %v615, %v751
        %v753 = vadd.f32 %v750, %v752
        %v754 = vstv %s465
        %v755 = vmul.f32 %v641, %v754
        %v756 = vadd.f32 %v753, %v755
        %v757 = vstv %s466
        %v758 = vmul.f32 %v667, %v757
        %v759 = vadd.f32 %v756, %v758
        %v760 = vstv %s467
        %v761 = vmul.f32 %v693, %v760
        %v762 = vadd.f32 %v759, %v761
        %v763 = vstv %s468
        %v764 = vmul.f32 %v719, %v763
        %v765 = vadd.f32 %v762, %v764
        %v766 = vstv %s469
        %v767 = vmul.f32 %v745, %v766
        %v768 = vadd.f32 %v765, %v767
        %v769 = vstv %s470
        %v770 = vadd.f32 %v768, %v769
        %771 = vst [vmem:[%s357] sm:$0x3] %v770
        %s772 = sand.u32 %s202, 1
        %s773 = scalar_lea.sflag [#allocation4], %s772
        %s774 = sand.u32 %s202, 1
        %s775 = smul.addr %s774, 2
        %s776 = scalar_lea.vmem [#allocation13], %s775
        // Predicated region
        $region69: #{tpu_custom_call.1} parent=47 // pred_check
          %p777 = pneg %p212
        $region70: #{tpu_custom_call.1} parent=47 // pred_check_branch
          %779 = sbr.rel (%p777) target = $region72
        $region71: #{tpu_custom_call.1} parent=47 // pred_region
          %s781 = ssub.s32 32, 32
          %782 = vsyncadd %s773, %s781
          %s783 = sadd.s32 %s31, %s30
          %s784 = smul.addr %s783, 32
          %s785 = scalar_lea.hbm %s7, %s784
          %s787 = sshll.u32 %s776, 4
          %s788 = int_to_ptr.vmem [resolvable:$true] %s787
          %790 = dma.vmem_to_hbm [thread:$0]  %s788, 32, %s785, %s773
        $region72: #{tpu_custom_call.1} parent=47 // pred_fallthru
          _
      $region48: #{tpu_custom_call.1} parent=5 // pred_fallthru
        _
      %p791 = scmp.le.s32.totalorder 2, %s21
      // Predicated region
      $region73: #{tpu_custom_call.1} parent=5 // pred_check
        %p792 = pneg %p791
      $region74: #{tpu_custom_call.1} parent=5 // pred_check_branch
        %794 = sbr.rel (%p792) target = $region76
      $region75: #{tpu_custom_call.1} parent=5 // pred_region
        %s795 = ssub.s32 %s21, 2
        // Predicated region
        $region77: #{tpu_custom_call.1} parent=75 // pred_check
          %p796 = pneg %p218
        $region78: #{tpu_custom_call.1} parent=75 // pred_check_branch
          %798 = sbr.rel (%p796) target = $region80
        $region79: #{tpu_custom_call.1} parent=75 // pred_region
          %s799 = sand.u32 %s203, 1
          %s800 = scalar_lea.sflag [#allocation4], %s799
          %s801 = sand.u32 %s203, 1
          %s802 = smul.addr %s801, 2
          %s803 = scalar_lea.vmem [#allocation13], %s802
          %804 = dma.done %s800, 32
        $region80: #{tpu_custom_call.1} parent=75 // pred_fallthru
          _
      $region76: #{tpu_custom_call.1} parent=5 // pred_fallthru
        _
    $region6: #{tpu_custom_call.1} parent=1 // loop_footer
      %s25 = sadd.s32 1, %s21
    $region7: #{tpu_custom_call.1} parent=1 // loop_footer_branch
      %20 = sbr.rel target = $region3
    $region8: #{tpu_custom_call.1} parent=1 // loop_exit
      _
    %805 = vsyncpa [#allocation4], 1
    %s806 = scalar_lea.sflag [#allocation4], 1
    %807 = vsyncpa %s806, 1
    %808 = vsyncpa [#allocation5], 1
    %s809 = scalar_lea.sflag [#allocation5], 1
    %810 = vsyncpa %s809, 1
    %811 = vsyncpa [#allocation6], 1
    %s812 = scalar_lea.sflag [#allocation6], 1
    %813 = vsyncpa %s812, 1
    %814 = vsyncpa [#allocation9], 1
    %815 = vsyncpa [#allocation12], 1

</llo_original>
